<compile_context>
chip_gen: v7x
topology: tpu7x:2x2x1
jax: 0.10.0
libtpu: 0.0.40
codegen_flags: <defaults>
</compile_context>

<pallas_src>
import jax
import jax.numpy as jnp
from jax import lax
from jax.experimental import pallas as pl
from jax.experimental.pallas import tpu as pltpu


def make_attention_kernel(embed_size: int, heads: int):
    head_dim = embed_size // heads

    def kernel(q_ref, k_ref, v_ref, bias_ref,
               wq_ref, wk_ref, wv_ref, wo_ref, bo_ref,
               o_ref, qp_s, kp_s, vp_s, ctx_s):
        # q block: (1, bq, E); k/v blocks: (1, Lk, E); bias: (1, bq, Lk)
        # wq/wk/wv: block-diagonal (E, E), pre-transposed, scale folded into wq
        # wo: (E, E) pre-transposed (in, out); bo: (1, E)

        # --- merged, lane-dense projections on the MXU -----------------------
        qp = jnp.dot(q_ref[0], wq_ref[...], preferred_element_type=jnp.float32)
        kp = jnp.dot(k_ref[0], wk_ref[...], preferred_element_type=jnp.float32)
        vp = jnp.dot(v_ref[0], wv_ref[...], preferred_element_type=jnp.float32)

        # scatter to head-major VMEM scratch with static slices (no transposes)
        for h in range(heads):
            sl = slice(h * head_dim, (h + 1) * head_dim)
            qp_s[h] = qp[:, sl]
            kp_s[h] = kp[:, sl]
            vp_s[h] = vp[:, sl]

        bias = bias_ref[0]                                   # (bq, Lk) f32

        # --- per-head attention (energies already carry the 1/sqrt(E) scale) -
        def head_body(h, carry):
            qh = qp_s[h]                                     # (bq, D)
            kh = kp_s[h]                                     # (Lk, D)
            vh = vp_s[h]                                     # (Lk, D)
            s = lax.dot_general(qh, kh, (((1,), (1,)), ((), ())),
                                preferred_element_type=jnp.float32)
            s = s + bias                                     # additive mask bias
            m = jnp.max(s, axis=-1, keepdims=True)
            p = jnp.exp(s - m)
            inv = pl.reciprocal(jnp.sum(p, axis=-1, keepdims=True), approx=True)
            ctx_s[h] = jnp.dot(p, vh, preferred_element_type=jnp.float32) * inv
            return carry

        lax.fori_loop(0, heads, head_body, 0, unroll=True)

        # --- gather heads and run fc_out as one lane-dense matmul ------------
        ctx = jnp.concatenate([ctx_s[h] for h in range(heads)], axis=-1)  # (bq, E)
        out = jnp.dot(ctx, wo_ref[...], preferred_element_type=jnp.float32)
        o_ref[0] = (out + bo_ref[...]).astype(o_ref.dtype)

    return kernel


def _pick_block_q(lq: int) -> int:
    for cand in (512, 256, 128):
        if lq % cand == 0:
            return cand
    return lq


def self_attention(q, k, v, mask, params, embed_size, heads):
    N, Lq, E = q.shape
    Lk = k.shape[1]
    Lv = v.shape[1]
    assert E == embed_size and Lk == Lv
    D = embed_size // heads
    assert D * heads == embed_size
    scale = float(embed_size) ** 0.5

    # Block-diagonal (E, E) projections, pre-transposed to (in, out); the
    # 1/sqrt(embed_size) softmax scale is folded into the query weight.
    eye = jnp.eye(heads, dtype=params["wq"].dtype)
    wq_bd = jnp.kron(eye, params["wq"].T) * jnp.asarray(1.0 / scale,
                                                        params["wq"].dtype)
    wk_bd = jnp.kron(eye, params["wk"].T)
    wv_bd = jnp.kron(eye, params["wv"].T)
    wo_t = params["wo"].T                                   # (E_in, E_out)
    bo = params["bo"].reshape(1, embed_size)

    # Additive mask bias (f32); -1e20/scale because the scale is already folded
    # into the energies.  Shared across batch when the mask is batch-broadcast.
    if mask is None:
        bias = jnp.zeros((1, Lq, Lk), jnp.float32)
    else:
        m = mask.reshape(mask.shape[0], Lq, Lk)
        bias = jnp.where(m == 0, jnp.float32(-1e20 / scale), jnp.float32(0.0))
    if bias.shape[0] == N:
        bias_map = lambda n, t: (n, t, 0)
    else:
        bias_map = lambda n, t: (0, t, 0)

    block_q = _pick_block_q(Lq)
    tq = Lq // block_q

    kernel = make_attention_kernel(embed_size, heads)

    return pl.pallas_call(
        kernel,
        out_shape=jax.ShapeDtypeStruct((N, Lq, embed_size), q.dtype),
        grid_spec=pltpu.PrefetchScalarGridSpec(
            num_scalar_prefetch=0,
            grid=(N, tq),
            in_specs=[
                pl.BlockSpec((1, block_q, E), lambda n, t: (n, t, 0)),
                pl.BlockSpec((1, Lk, E), lambda n, t: (n, 0, 0)),
                pl.BlockSpec((1, Lv, E), lambda n, t: (n, 0, 0)),
                pl.BlockSpec((1, block_q, Lk), bias_map),
                pl.BlockSpec((E, E), lambda n, t: (0, 0)),
                pl.BlockSpec((E, E), lambda n, t: (0, 0)),
                pl.BlockSpec((E, E), lambda n, t: (0, 0)),
                pl.BlockSpec((E, E), lambda n, t: (0, 0)),
                pl.BlockSpec((1, E), lambda n, t: (0, 0)),
            ],
            out_specs=pl.BlockSpec((1, block_q, E), lambda n, t: (n, t, 0)),
            scratch_shapes=[
                pltpu.VMEM((heads, block_q, D), jnp.float32),   # qp (head-major)
                pltpu.VMEM((heads, Lk, D), jnp.float32),        # kp
                pltpu.VMEM((heads, Lv, D), jnp.float32),        # vp
                pltpu.VMEM((heads, block_q, D), jnp.float32),   # ctx
            ],
        ),
        compiler_params=pltpu.CompilerParams(
            dimension_semantics=("parallel", "parallel")),
    )(q, k, v, bias, wq_bd, wk_bd, wv_bd, wo_t, bo)


def reference(q, k, v, mask, params, embed_size, heads):
    """Pure-JAX replica of the PyTorch SelfAttention forward for validation."""
    N, Lq, E = q.shape
    D = embed_size // heads
    qr = q.reshape(N, Lq, heads, D)
    kr = k.reshape(N, -1, heads, D)
    vr = v.reshape(N, -1, heads, D)
    queries = jnp.einsum("nqhd,od->nqho", qr, params["wq"])
    keys = jnp.einsum("nkhd,od->nkho", kr, params["wk"])
    values = jnp.einsum("nkhd,od->nkho", vr, params["wv"])
    energy = jnp.einsum("nqhd,nkhd->nhqk", queries, keys)
    if mask is not None:
        energy = jnp.where(mask == 0, jnp.float32(-1e20), energy)
    attn = jax.nn.softmax(energy / embed_size ** 0.5, axis=3)
    out = jnp.einsum("nhqk,nkhd->nqhd", attn, values)
    out = out.reshape(N, Lq, heads * D)
    return out @ params["wo"].T + params["bo"]


if __name__ == "__main__":
    N, L, E, H = 2, 8, 32, 2
    D = E // H

    key = jax.random.PRNGKey(0)
    k1, k2, k3, k4, k5, k6, k7, k8 = jax.random.split(key, 8)
    q = jax.random.normal(k1, (N, L, E), jnp.float32)
    k_in = jax.random.normal(k2, (N, L, E), jnp.float32)
    v = jax.random.normal(k3, (N, L, E), jnp.float32)

    # parameter shapes follow nn.Linear: (out_features, in_features)
    params = {
        "wq": jax.random.normal(k4, (D, D), jnp.float32) * 0.1,
        "wk": jax.random.normal(k5, (D, D), jnp.float32) * 0.1,
        "wv": jax.random.normal(k6, (D, D), jnp.float32) * 0.1,
        "wo": jax.random.normal(k7, (E, E), jnp.float32) * 0.1,
        "bo": jax.random.normal(k8, (E,), jnp.float32) * 0.1,
    }

    # causal mask, broadcast across batch/heads like PyTorch masked_fill
    mask = jnp.tril(jnp.ones((L, L), jnp.int32))[None, None]   # (1, 1, L, L)

    out = self_attention(q, k_in, v, mask, params, E, H)
    jax.block_until_ready(out)

    ref = reference(q, k_in, v, mask, params, E, H)
    err = float(jnp.max(jnp.abs(out - ref)))
    # tolerance is loose only because of the approximate (EUP) reciprocal used
    # in the softmax normalisation; structural bugs would be orders larger.
    assert err < 1e-2, err
    print("KERNEL_OK")
</pallas_src>

<mosaic_0001>
module attributes {stable_mosaic.version = 11 : i64} {
  func.func @kernel(%arg0: i32, %arg1: i32, %arg2: memref<1x8x32xf32, #tpu.memory_space<vmem>>, %arg3: memref<1x8x32xf32, #tpu.memory_space<vmem>>, %arg4: memref<1x8x32xf32, #tpu.memory_space<vmem>>, %arg5: memref<1x8x8xf32, #tpu.memory_space<vmem>>, %arg6: memref<32x32xf32, #tpu.memory_space<vmem>>, %arg7: memref<32x32xf32, #tpu.memory_space<vmem>>, %arg8: memref<32x32xf32, #tpu.memory_space<vmem>>, %arg9: memref<32x32xf32, #tpu.memory_space<vmem>>, %arg10: memref<1x32xf32, #tpu.memory_space<vmem>>, %arg11: memref<1x8x32xf32, #tpu.memory_space<vmem>>, %arg12: memref<2x8x16xf32, #tpu.memory_space<vmem>>, %arg13: memref<2x8x16xf32, #tpu.memory_space<vmem>>, %arg14: memref<2x8x16xf32, #tpu.memory_space<vmem>>, %arg15: memref<2x8x16xf32, #tpu.memory_space<vmem>>) attributes {dimension_semantics = [#tpu.dimension_semantics<parallel>, #tpu.dimension_semantics<parallel>], iteration_bounds = array<i64: 2, 1>, scalar_prefetch = 0 : i64, scratch_operands = 4 : i64, tpu.core_type = #tpu.core_type<tc>, window_params = [{transform_indices = @transform_0, window_bounds = array<i64: 1, 8, 32>}, {transform_indices = @transform_1, window_bounds = array<i64: 1, 8, 32>}, {transform_indices = @transform_2, window_bounds = array<i64: 1, 8, 32>}, {transform_indices = @transform_3, window_bounds = array<i64: 1, 8, 8>}, {pipeline_mode = #tpu.pipeline_mode<synchronous>, transform_indices = @transform_4, window_bounds = array<i64: 32, 32>}, {pipeline_mode = #tpu.pipeline_mode<synchronous>, transform_indices = @transform_5, window_bounds = array<i64: 32, 32>}, {pipeline_mode = #tpu.pipeline_mode<synchronous>, transform_indices = @transform_6, window_bounds = array<i64: 32, 32>}, {pipeline_mode = #tpu.pipeline_mode<synchronous>, transform_indices = @transform_7, window_bounds = array<i64: 32, 32>}, {pipeline_mode = #tpu.pipeline_mode<synchronous>, transform_indices = @transform_8, window_bounds = array<i64: 1, 32>}, {transform_indices = @transform_9, window_bounds = array<i64: 1, 8, 32>}]} {
    %c0 = arith.constant 0 : index
    %c0_0 = arith.constant 0 : index
    %c0_1 = arith.constant 0 : index
    %0 = vector.load %arg2[%c0, %c0_0, %c0_1] : memref<1x8x32xf32, #tpu.memory_space<vmem>>, vector<1x8x32xf32>
    %1 = vector.shape_cast %0 : vector<1x8x32xf32> to vector<8x32xf32>
    %c0_2 = arith.constant 0 : index
    %c0_3 = arith.constant 0 : index
    %2 = vector.load %arg6[%c0_2, %c0_3] : memref<32x32xf32, #tpu.memory_space<vmem>>, vector<32x32xf32>
    %cst = arith.constant dense<0.000000e+00> : vector<8x32xf32>
    %3 = tpu.matmul %1, %2, %cst {dimension_numbers = #tpu.dot_dimension_numbers<[1], [0], [0], [1], [0, 0, 1, 1], [], []>} : vector<8x32xf32>, vector<32x32xf32>, vector<8x32xf32> -> vector<8x32xf32>
    %c0_4 = arith.constant 0 : index
    %c0_5 = arith.constant 0 : index
    %c0_6 = arith.constant 0 : index
    %4 = vector.load %arg3[%c0_4, %c0_5, %c0_6] : memref<1x8x32xf32, #tpu.memory_space<vmem>>, vector<1x8x32xf32>
    %5 = vector.shape_cast %4 : vector<1x8x32xf32> to vector<8x32xf32>
    %c0_7 = arith.constant 0 : index
    %c0_8 = arith.constant 0 : index
    %6 = vector.load %arg7[%c0_7, %c0_8] : memref<32x32xf32, #tpu.memory_space<vmem>>, vector<32x32xf32>
    %cst_9 = arith.constant dense<0.000000e+00> : vector<8x32xf32>
    %7 = tpu.matmul %5, %6, %cst_9 {dimension_numbers = #tpu.dot_dimension_numbers<[1], [0], [0], [1], [0, 0, 1, 1], [], []>} : vector<8x32xf32>, vector<32x32xf32>, vector<8x32xf32> -> vector<8x32xf32>
    %c0_10 = arith.constant 0 : index
    %c0_11 = arith.constant 0 : index
    %c0_12 = arith.constant 0 : index
    %8 = vector.load %arg4[%c0_10, %c0_11, %c0_12] : memref<1x8x32xf32, #tpu.memory_space<vmem>>, vector<1x8x32xf32>
    %9 = vector.shape_cast %8 : vector<1x8x32xf32> to vector<8x32xf32>
    %c0_13 = arith.constant 0 : index
    %c0_14 = arith.constant 0 : index
    %10 = vector.load %arg8[%c0_13, %c0_14] : memref<32x32xf32, #tpu.memory_space<vmem>>, vector<32x32xf32>
    %cst_15 = arith.constant dense<0.000000e+00> : vector<8x32xf32>
    %11 = tpu.matmul %9, %10, %cst_15 {dimension_numbers = #tpu.dot_dimension_numbers<[1], [0], [0], [1], [0, 0, 1, 1], [], []>} : vector<8x32xf32>, vector<32x32xf32>, vector<8x32xf32> -> vector<8x32xf32>
    %12 = vector.extract_strided_slice %3 {offsets = [0, 0], sizes = [8, 16], strides = [1, 1]} : vector<8x32xf32> to vector<8x16xf32>
    %c0_16 = arith.constant 0 : index
    %c0_17 = arith.constant 0 : index
    %c0_18 = arith.constant 0 : index
    %13 = vector.load %arg12[%c0_16, %c0_17, %c0_18] : memref<2x8x16xf32, #tpu.memory_space<vmem>>, vector<1x8x16xf32>
    %14 = vector.shape_cast %13 : vector<1x8x16xf32> to vector<8x16xf32>
    %15 = vector.shape_cast %12 : vector<8x16xf32> to vector<1x8x16xf32>
    tpu.vector_store %arg12[%c0_16, %c0_17, %c0_18], %15 {strides = array<i32>} : memref<2x8x16xf32, #tpu.memory_space<vmem>>, vector<1x8x16xf32>,
    %16 = vector.extract_strided_slice %7 {offsets = [0, 0], sizes = [8, 16], strides = [1, 1]} : vector<8x32xf32> to vector<8x16xf32>
    %c0_19 = arith.constant 0 : index
    %c0_20 = arith.constant 0 : index
    %c0_21 = arith.constant 0 : index
    %17 = vector.load %arg13[%c0_19, %c0_20, %c0_21] : memref<2x8x16xf32, #tpu.memory_space<vmem>>, vector<1x8x16xf32>
    %18 = vector.shape_cast %17 : vector<1x8x16xf32> to vector<8x16xf32>
    %19 = vector.shape_cast %16 : vector<8x16xf32> to vector<1x8x16xf32>
    tpu.vector_store %arg13[%c0_19, %c0_20, %c0_21], %19 {strides = array<i32>} : memref<2x8x16xf32, #tpu.memory_space<vmem>>, vector<1x8x16xf32>,
    %20 = vector.extract_strided_slice %11 {offsets = [0, 0], sizes = [8, 16], strides = [1, 1]} : vector<8x32xf32> to vector<8x16xf32>
    %c0_22 = arith.constant 0 : index
    %c0_23 = arith.constant 0 : index
    %c0_24 = arith.constant 0 : index
    %21 = vector.load %arg14[%c0_22, %c0_23, %c0_24] : memref<2x8x16xf32, #tpu.memory_space<vmem>>, vector<1x8x16xf32>
    %22 = vector.shape_cast %21 : vector<1x8x16xf32> to vector<8x16xf32>
    %23 = vector.shape_cast %20 : vector<8x16xf32> to vector<1x8x16xf32>
    tpu.vector_store %arg14[%c0_22, %c0_23, %c0_24], %23 {strides = array<i32>} : memref<2x8x16xf32, #tpu.memory_space<vmem>>, vector<1x8x16xf32>,
    %24 = vector.extract_strided_slice %3 {offsets = [0, 16], sizes = [8, 16], strides = [1, 1]} : vector<8x32xf32> to vector<8x16xf32>
    %c1 = arith.constant 1 : index
    %c0_25 = arith.constant 0 : index
    %c0_26 = arith.constant 0 : index
    %25 = vector.load %arg12[%c1, %c0_25, %c0_26] : memref<2x8x16xf32, #tpu.memory_space<vmem>>, vector<1x8x16xf32>
    %26 = vector.shape_cast %25 : vector<1x8x16xf32> to vector<8x16xf32>
    %27 = vector.shape_cast %24 : vector<8x16xf32> to vector<1x8x16xf32>
    tpu.vector_store %arg12[%c1, %c0_25, %c0_26], %27 {strides = array<i32>} : memref<2x8x16xf32, #tpu.memory_space<vmem>>, vector<1x8x16xf32>,
    %28 = vector.extract_strided_slice %7 {offsets = [0, 16], sizes = [8, 16], strides = [1, 1]} : vector<8x32xf32> to vector<8x16xf32>
    %c1_27 = arith.constant 1 : index
    %c0_28 = arith.constant 0 : index
    %c0_29 = arith.constant 0 : index
    %29 = vector.load %arg13[%c1_27, %c0_28, %c0_29] : memref<2x8x16xf32, #tpu.memory_space<vmem>>, vector<1x8x16xf32>
    %30 = vector.shape_cast %29 : vector<1x8x16xf32> to vector<8x16xf32>
    %31 = vector.shape_cast %28 : vector<8x16xf32> to vector<1x8x16xf32>
    tpu.vector_store %arg13[%c1_27, %c0_28, %c0_29], %31 {strides = array<i32>} : memref<2x8x16xf32, #tpu.memory_space<vmem>>, vector<1x8x16xf32>,
    %32 = vector.extract_strided_slice %11 {offsets = [0, 16], sizes = [8, 16], strides = [1, 1]} : vector<8x32xf32> to vector<8x16xf32>
    %c1_30 = arith.constant 1 : index
    %c0_31 = arith.constant 0 : index
    %c0_32 = arith.constant 0 : index
    %33 = vector.load %arg14[%c1_30, %c0_31, %c0_32] : memref<2x8x16xf32, #tpu.memory_space<vmem>>, vector<1x8x16xf32>
    %34 = vector.shape_cast %33 : vector<1x8x16xf32> to vector<8x16xf32>
    %35 = vector.shape_cast %32 : vector<8x16xf32> to vector<1x8x16xf32>
    tpu.vector_store %arg14[%c1_30, %c0_31, %c0_32], %35 {strides = array<i32>} : memref<2x8x16xf32, #tpu.memory_space<vmem>>, vector<1x8x16xf32>,
    %c0_33 = arith.constant 0 : index
    %c0_34 = arith.constant 0 : index
    %c0_35 = arith.constant 0 : index
    %36 = vector.load %arg5[%c0_33, %c0_34, %c0_35] : memref<1x8x8xf32, #tpu.memory_space<vmem>>, vector<1x8x8xf32>
    %37 = vector.shape_cast %36 : vector<1x8x8xf32> to vector<8x8xf32>
    %c0_i32 = arith.constant 0 : i32
    %38 = arith.index_cast %c0_i32 : i32 to index
    %c0_36 = arith.constant 0 : index
    %c0_37 = arith.constant 0 : index
    %39 = vector.load %arg12[%38, %c0_36, %c0_37] : memref<2x8x16xf32, #tpu.memory_space<vmem>>, vector<1x8x16xf32>
    %40 = vector.shape_cast %39 : vector<1x8x16xf32> to vector<8x16xf32>
    %41 = arith.index_cast %c0_i32 : i32 to index
    %c0_38 = arith.constant 0 : index
    %c0_39 = arith.constant 0 : index
    %42 = vector.load %arg13[%41, %c0_38, %c0_39] : memref<2x8x16xf32, #tpu.memory_space<vmem>>, vector<1x8x16xf32>
    %43 = vector.shape_cast %42 : vector<1x8x16xf32> to vector<8x16xf32>
    %44 = arith.index_cast %c0_i32 : i32 to index
    %c0_40 = arith.constant 0 : index
    %c0_41 = arith.constant 0 : index
    %45 = vector.load %arg14[%44, %c0_40, %c0_41] : memref<2x8x16xf32, #tpu.memory_space<vmem>>, vector<1x8x16xf32>
    %46 = vector.shape_cast %45 : vector<1x8x16xf32> to vector<8x16xf32>
    %cst_42 = arith.constant dense<0.000000e+00> : vector<8x8xf32>
    %47 = tpu.matmul %40, %43, %cst_42 {dimension_numbers = #tpu.dot_dimension_numbers<[1], [1], [0], [0], [0, 0, 1, 0], [], []>} : vector<8x16xf32>, vector<8x16xf32>, vector<8x8xf32> -> vector<8x8xf32>
    %48 = arith.addf %47, %37 : vector<8x8xf32>
    %cst_43 = arith.constant dense<0xFF800000> : vector<8xf32>
    %49 = vector.multi_reduction <maximumf>, %48, %cst_43 [1] : vector<8x8xf32> to vector<8xf32>
    %50 = vector.shape_cast %49 : vector<8xf32> to vector<8x1xf32>
    %51 = vector.broadcast %50 : vector<8x1xf32> to vector<8x8xf32>
    %52 = arith.subf %48, %51 : vector<8x8xf32>
    %53 = math.exp %52 : vector<8x8xf32>
    %cst_44 = arith.constant dense<0.000000e+00> : vector<8xf32>
    %54 = vector.multi_reduction <add>, %53, %cst_44 [1] : vector<8x8xf32> to vector<8xf32>
    %55 = vector.shape_cast %54 : vector<8xf32> to vector<8x1xf32>
    %56 = tpu.reciprocal %55 {approx = true} : vector<8x1xf32> -> vector<8x1xf32>
    %cst_45 = arith.constant dense<0.000000e+00> : vector<8x16xf32>
    %57 = tpu.matmul %53, %46, %cst_45 {dimension_numbers = #tpu.dot_dimension_numbers<[1], [0], [0], [1], [0, 0, 1, 1], [], []>} : vector<8x8xf32>, vector<8x16xf32>, vector<8x16xf32> -> vector<8x16xf32>
    %58 = vector.broadcast %56 : vector<8x1xf32> to vector<8x16xf32>
    %59 = arith.mulf %57, %58 : vector<8x16xf32>
    %60 = arith.index_cast %c0_i32 : i32 to index
    %c0_46 = arith.constant 0 : index
    %c0_47 = arith.constant 0 : index
    %61 = vector.load %arg15[%60, %c0_46, %c0_47] : memref<2x8x16xf32, #tpu.memory_space<vmem>>, vector<1x8x16xf32>
    %62 = vector.shape_cast %61 : vector<1x8x16xf32> to vector<8x16xf32>
    %63 = vector.shape_cast %59 : vector<8x16xf32> to vector<1x8x16xf32>
    tpu.vector_store %arg15[%60, %c0_46, %c0_47], %63 {strides = array<i32>} : memref<2x8x16xf32, #tpu.memory_space<vmem>>, vector<1x8x16xf32>,
    %c1_i32 = arith.constant 1 : i32
    %64 = arith.index_cast %c1_i32 : i32 to index
    %c0_48 = arith.constant 0 : index
    %c0_49 = arith.constant 0 : index
    %65 = vector.load %arg12[%64, %c0_48, %c0_49] : memref<2x8x16xf32, #tpu.memory_space<vmem>>, vector<1x8x16xf32>
    %66 = vector.shape_cast %65 : vector<1x8x16xf32> to vector<8x16xf32>
    %67 = arith.index_cast %c1_i32 : i32 to index
    %c0_50 = arith.constant 0 : index
    %c0_51 = arith.constant 0 : index
    %68 = vector.load %arg13[%67, %c0_50, %c0_51] : memref<2x8x16xf32, #tpu.memory_space<vmem>>, vector<1x8x16xf32>
    %69 = vector.shape_cast %68 : vector<1x8x16xf32> to vector<8x16xf32>
    %70 = arith.index_cast %c1_i32 : i32 to index
    %c0_52 = arith.constant 0 : index
    %c0_53 = arith.constant 0 : index
    %71 = vector.load %arg14[%70, %c0_52, %c0_53] : memref<2x8x16xf32, #tpu.memory_space<vmem>>, vector<1x8x16xf32>
    %72 = vector.shape_cast %71 : vector<1x8x16xf32> to vector<8x16xf32>
    %cst_54 = arith.constant dense<0.000000e+00> : vector<8x8xf32>
    %73 = tpu.matmul %66, %69, %cst_54 {dimension_numbers = #tpu.dot_dimension_numbers<[1], [1], [0], [0], [0, 0, 1, 0], [], []>} : vector<8x16xf32>, vector<8x16xf32>, vector<8x8xf32> -> vector<8x8xf32>
    %74 = arith.addf %73, %37 : vector<8x8xf32>
    %cst_55 = arith.constant dense<0xFF800000> : vector<8xf32>
    %75 = vector.multi_reduction <maximumf>, %74, %cst_55 [1] : vector<8x8xf32> to vector<8xf32>
    %76 = vector.shape_cast %75 : vector<8xf32> to vector<8x1xf32>
    %77 = vector.broadcast %76 : vector<8x1xf32> to vector<8x8xf32>
    %78 = arith.subf %74, %77 : vector<8x8xf32>
    %79 = math.exp %78 : vector<8x8xf32>
    %cst_56 = arith.constant dense<0.000000e+00> : vector<8xf32>
    %80 = vector.multi_reduction <add>, %79, %cst_56 [1] : vector<8x8xf32> to vector<8xf32>
    %81 = vector.shape_cast %80 : vector<8xf32> to vector<8x1xf32>
    %82 = tpu.reciprocal %81 {approx = true} : vector<8x1xf32> -> vector<8x1xf32>
    %cst_57 = arith.constant dense<0.000000e+00> : vector<8x16xf32>
    %83 = tpu.matmul %79, %72, %cst_57 {dimension_numbers = #tpu.dot_dimension_numbers<[1], [0], [0], [1], [0, 0, 1, 1], [], []>} : vector<8x8xf32>, vector<8x16xf32>, vector<8x16xf32> -> vector<8x16xf32>
    %84 = vector.broadcast %82 : vector<8x1xf32> to vector<8x16xf32>
    %85 = arith.mulf %83, %84 : vector<8x16xf32>
    %86 = arith.index_cast %c1_i32 : i32 to index
    %c0_58 = arith.constant 0 : index
    %c0_59 = arith.constant 0 : index
    %87 = vector.load %arg15[%86, %c0_58, %c0_59] : memref<2x8x16xf32, #tpu.memory_space<vmem>>, vector<1x8x16xf32>
    %88 = vector.shape_cast %87 : vector<1x8x16xf32> to vector<8x16xf32>
    %89 = vector.shape_cast %85 : vector<8x16xf32> to vector<1x8x16xf32>
    tpu.vector_store %arg15[%86, %c0_58, %c0_59], %89 {strides = array<i32>} : memref<2x8x16xf32, #tpu.memory_space<vmem>>, vector<1x8x16xf32>,
    %c2_i32 = arith.constant 2 : i32
    %c0_60 = arith.constant 0 : index
    %c0_61 = arith.constant 0 : index
    %c0_62 = arith.constant 0 : index
    %90 = vector.load %arg15[%c0_60, %c0_61, %c0_62] : memref<2x8x16xf32, #tpu.memory_space<vmem>>, vector<1x8x16xf32>
    %91 = vector.shape_cast %90 : vector<1x8x16xf32> to vector<8x16xf32>
    %c1_63 = arith.constant 1 : index
    %c0_64 = arith.constant 0 : index
    %c0_65 = arith.constant 0 : index
    %92 = vector.load %arg15[%c1_63, %c0_64, %c0_65] : memref<2x8x16xf32, #tpu.memory_space<vmem>>, vector<1x8x16xf32>
    %93 = vector.shape_cast %92 : vector<1x8x16xf32> to vector<8x16xf32>
    %94 = tpu.concatenate %91, %93 in 1 : vector<8x16xf32>, vector<8x16xf32> -> vector<8x32xf32>
    %c0_66 = arith.constant 0 : index
    %c0_67 = arith.constant 0 : index
    %95 = vector.load %arg9[%c0_66, %c0_67] : memref<32x32xf32, #tpu.memory_space<vmem>>, vector<32x32xf32>
    %cst_68 = arith.constant dense<0.000000e+00> : vector<8x32xf32>
    %96 = tpu.matmul %94, %95, %cst_68 {dimension_numbers = #tpu.dot_dimension_numbers<[1], [0], [0], [1], [0, 0, 1, 1], [], []>} : vector<8x32xf32>, vector<32x32xf32>, vector<8x32xf32> -> vector<8x32xf32>
    %c0_69 = arith.constant 0 : index
    %c0_70 = arith.constant 0 : index
    %97 = vector.load %arg10[%c0_69, %c0_70] : memref<1x32xf32, #tpu.memory_space<vmem>>, vector<1x32xf32>
    %98 = vector.broadcast %97 : vector<1x32xf32> to vector<8x32xf32>
    %99 = arith.addf %96, %98 : vector<8x32xf32>
    %c0_71 = arith.constant 0 : index
    %c0_72 = arith.constant 0 : index
    %c0_73 = arith.constant 0 : index
    %100 = vector.load %arg11[%c0_71, %c0_72, %c0_73] : memref<1x8x32xf32, #tpu.memory_space<vmem>>, vector<1x8x32xf32>
    %101 = vector.shape_cast %100 : vector<1x8x32xf32> to vector<8x32xf32>
    %102 = vector.shape_cast %99 : vector<8x32xf32> to vector<1x8x32xf32>
    tpu.vector_store %arg11[%c0_71, %c0_72, %c0_73], %102 {strides = array<i32>} : memref<1x8x32xf32, #tpu.memory_space<vmem>>, vector<1x8x32xf32>,
    return
  }
  func.func @transform_0(%arg0: i32, %arg1: i32) -> (i32, i32, i32) {
    %c0_i32 = arith.constant 0 : i32
    %c0_i32_0 = arith.constant 0 : i32
    return %arg0, %arg1, %c0_i32 : i32, i32, i32
  }
  func.func @transform_1(%arg0: i32, %arg1: i32) -> (i32, i32, i32) {
    %c0_i32 = arith.constant 0 : i32
    %c0_i32_0 = arith.constant 0 : i32
    %c0_i32_1 = arith.constant 0 : i32
    return %arg0, %c0_i32, %c0_i32_0 : i32, i32, i32
  }
  func.func @transform_2(%arg0: i32, %arg1: i32) -> (i32, i32, i32) {
    %c0_i32 = arith.constant 0 : i32
    %c0_i32_0 = arith.constant 0 : i32
    %c0_i32_1 = arith.constant 0 : i32
    return %arg0, %c0_i32, %c0_i32_0 : i32, i32, i32
  }
  func.func @transform_3(%arg0: i32, %arg1: i32) -> (i32, i32, i32) {
    %c0_i32 = arith.constant 0 : i32
    %c0_i32_0 = arith.constant 0 : i32
    %c0_i32_1 = arith.constant 0 : i32
    return %c0_i32, %arg1, %c0_i32_0 : i32, i32, i32
  }
  func.func @transform_4(%arg0: i32, %arg1: i32) -> (i32, i32) {
    %c0_i32 = arith.constant 0 : i32
    %c0_i32_0 = arith.constant 0 : i32
    %c0_i32_1 = arith.constant 0 : i32
    return %c0_i32, %c0_i32_0 : i32, i32
  }
  func.func @transform_5(%arg0: i32, %arg1: i32) -> (i32, i32) {
    %c0_i32 = arith.constant 0 : i32
    %c0_i32_0 = arith.constant 0 : i32
    %c0_i32_1 = arith.constant 0 : i32
    return %c0_i32, %c0_i32_0 : i32, i32
  }
  func.func @transform_6(%arg0: i32, %arg1: i32) -> (i32, i32) {
    %c0_i32 = arith.constant 0 : i32
    %c0_i32_0 = arith.constant 0 : i32
    %c0_i32_1 = arith.constant 0 : i32
    return %c0_i32, %c0_i32_0 : i32, i32
  }
  func.func @transform_7(%arg0: i32, %arg1: i32) -> (i32, i32) {
    %c0_i32 = arith.constant 0 : i32
    %c0_i32_0 = arith.constant 0 : i32
    %c0_i32_1 = arith.constant 0 : i32
    return %c0_i32, %c0_i32_0 : i32, i32
  }
  func.func @transform_8(%arg0: i32, %arg1: i32) -> (i32, i32) {
    %c0_i32 = arith.constant 0 : i32
    %c0_i32_0 = arith.constant 0 : i32
    %c0_i32_1 = arith.constant 0 : i32
    return %c0_i32, %c0_i32_0 : i32, i32
  }
  func.func @transform_9(%arg0: i32, %arg1: i32) -> (i32, i32, i32) {
    %c0_i32 = arith.constant 0 : i32
    %c0_i32_0 = arith.constant 0 : i32
    return %arg0, %arg1, %c0_i32 : i32, i32, i32
  }
}

</mosaic_0001>

<llo_original>
// kernel: tpu_custom_call.1
$region0: #{tpu_custom_call.1}
  #allocation0 [shape = 'u32[]', space=smem, size = 0x4, offset = 0x4, fixed_abs, tag = 'smem constant byte address 0x4 - core index']
  #allocation1 [shape = 'u32[144,128]{1,0:T(1,128)}', space=vmem, size = 0x12000, scoped, tag = 'internal scratch']
  #allocation2 [shape = 'f32[2,8,16]{2,1,0:T(8,128)}', space=vmem, size = 0x2000, scoped, tag = 'scratch operand']
  #allocation3 [shape = 'f32[2,8,16]{2,1,0:T(8,128)}', space=vmem, size = 0x2000, scoped, tag = 'scratch operand']
  #allocation4 [shape = 'f32[2,8,16]{2,1,0:T(8,128)}', space=vmem, size = 0x2000, scoped, tag = 'scratch operand']
  #allocation5 [shape = 'f32[2,8,16]{2,1,0:T(8,128)}', space=vmem, size = 0x2000, scoped, tag = 'scratch operand']
  %s0 = inlined_call_operand.hbm [shape: f32[2,8,32], index: 0, kind: input, shape index: {}]
  %s1 = inlined_call_operand.hbm [shape: f32[2,8,32], index: 1, kind: input, shape index: {}]
  %s2 = inlined_call_operand.hbm [shape: f32[2,8,32], index: 2, kind: input, shape index: {}]
  %s3 = inlined_call_operand.vmem [shape: f32[1,8,8], index: 3, kind: input, shape index: {}]
  %s4 = inlined_call_operand.hbm [shape: f32[32,32], index: 4, kind: input, shape index: {}]
  %s5 = inlined_call_operand.hbm [shape: f32[32,32], index: 5, kind: input, shape index: {}]
  %s6 = inlined_call_operand.hbm [shape: f32[32,32], index: 6, kind: input, shape index: {}]
  %s7 = inlined_call_operand.hbm [shape: f32[32,32], index: 7, kind: input, shape index: {}]
  %s8 = inlined_call_operand.vmem [shape: f32[1,32], index: 8, kind: input, shape index: {}]
  %s9 = inlined_call_operand.hbm [shape: f32[2,8,32], index: 9, kind: output, shape index: {}]
  %s10 = sld [smem:[#allocation0]]
  $region97: #{tpu_custom_call.1} parent=0
    _
  %s12 = ssub.s32 1, %s10
  %s13 = scalar_select 0, %s12, %s10
  $region1: #{tpu_custom_call.1} parent=0
    #allocation6 [shape = 'u8[8192]{0}', space=vmem, size = 0x2000, scoped, tag = 'input window, operand 0']
    #allocation7 [shape = 's32[2]{0}', space=sflag, size = 0x8, scoped, tag = 'scoped memory for tpu_custom_call.1']
    #allocation8 [shape = 's32[2]{0}', space=sflag, size = 0x8, scoped, tag = 'scoped memory for tpu_custom_call.1']
    #allocation9 [shape = 'u8[8192]{0}', space=vmem, size = 0x2000, scoped, tag = 'input window, operand 1']
    #allocation10 [shape = 's32[2]{0}', space=sflag, size = 0x8, scoped, tag = 'scoped memory for tpu_custom_call.1']
    #allocation11 [shape = 'u8[8192]{0}', space=vmem, size = 0x2000, scoped, tag = 'input window, operand 2']
    #allocation12 [shape = 'u8[16384]{0}', space=vmem, size = 0x4000, scoped, tag = 'input window, operand 4, single buffered']
    #allocation13 [shape = 's32[1]{0}', space=sflag, size = 0x4, scoped, tag = 'scoped memory for tpu_custom_call.1']
    #allocation14 [shape = 'u8[16384]{0}', space=vmem, size = 0x4000, scoped, tag = 'input window, operand 5, single buffered']
    #allocation15 [shape = 'u8[16384]{0}', space=vmem, size = 0x4000, scoped, tag = 'input window, operand 6, single buffered']
    #allocation16 [shape = 's32[1]{0}', space=sflag, size = 0x4, scoped, tag = 'scoped memory for tpu_custom_call.1']
    #allocation17 [shape = 'u8[16384]{0}', space=vmem, size = 0x4000, scoped, tag = 'input window, operand 7, single buffered']
    #allocation18 [shape = 'u8[8192]{0}', space=vmem, size = 0x2000, scoped, tag = 'output window, operand 0']
    %14 = vsyncpa [#allocation7], 0
    %s15 = scalar_lea.sflag [#allocation7], 1
    %16 = vsyncpa %s15, 0
    %17 = vsyncpa [#allocation10], 0
    %s18 = scalar_lea.sflag [#allocation10], 1
    %19 = vsyncpa %s18, 0
    %20 = vsyncpa [#allocation13], 0
    %21 = vsyncpa [#allocation16], 0
    %22 = vsyncpa [#allocation8], 0
    %s23 = scalar_lea.sflag [#allocation8], 1
    %24 = vsyncpa %s23, 0
    loop: start=0, step=1, limit=4
    $region2: #{tpu_custom_call.1} parent=1 // loop_pre_header
      _
    $region3: #{tpu_custom_call.1} parent=1 // loop_header
      %s26 = sphi 0, %s30
      %p27 = scmp.ge.s32.totalorder %s26, 4
      %s33 = sphi 0, %s45
      %s34 = sphi 0, %s41
      %s35 = sphi 0, %s33
      %s36 = sphi 0, %s34
      %s37 = sphi 0, %s35
      %s38 = sphi 0, %s36
      %s50 = sphi 0, %s52
      %s53 = sphi 0, %s50
      %s54 = sphi 0, %s53
      %s70 = sphi 0, %s54
      %s76 = sphi 0, %s78
      %s79 = sphi 0, %s76
      %s80 = sphi 0, %s79
      %s96 = sphi 0, %s80
      %s102 = sphi 0, %s104
      %s105 = sphi 0, %s102
      %s106 = sphi 0, %s105
      %s122 = sphi 0, %s106
      %s128 = sphi 0, %s130
      %s131 = sphi 0, %s128
      %s132 = sphi 0, %s131
      %s148 = sphi 0, %s132
      %s152 = sphi 0, %s152
      %s154 = sphi 0, %s152
      %s155 = sphi 0, %s154
      %s169 = sphi 0, %s155
      %s173 = sphi 0, %s173
      %s175 = sphi 0, %s173
      %s176 = sphi 0, %s175
      %s190 = sphi 0, %s176
      %s194 = sphi 0, %s194
      %s196 = sphi 0, %s194
      %s197 = sphi 0, %s196
      %s211 = sphi 0, %s197
      %s215 = sphi 0, %s215
      %s217 = sphi 0, %s215
      %s218 = sphi 0, %s217
      %s232 = sphi 0, %s218
      %s236 = sphi 0, %s236
      %s238 = sphi 0, %s236
      %s239 = sphi 0, %s238
      %s253 = sphi 0, %s239
      %s261 = sphi 0, %s263
      %s264 = sphi 0, %s261
      %s265 = sphi 0, %s264
      %s281 = sphi 0, %s265
    $region4: #{tpu_custom_call.1} parent=1 // loop_header_branch
      %29 = sbr.rel (%p27) target = $region8
    $region5: #{tpu_custom_call.1} parent=1 // loop_body
      %s31 = ssub.s32 %s26, 1
      %s32 = ssub.s32 %s26, 2
      %s39 = sadd.s32 1, %s34
      %p40 = scmp.ge.s32.totalorder %s39, 1
      %s41 = scalar_select %p40, 0, %s39
      %s42 = sadd.s32 1, %s33
      %s43 = scalar_select %p40, %s42, %s33
      %p44 = scmp.ge.s32.totalorder %s43, 2
      %s45 = scalar_select %p44, 0, %s43
      %s46 = ssub.s32 %s33, %s45
      %s47 = ssub.s32 %s34, %s41
      %s48 = sor.u32 %s46, %s47
      %p49 = scmp.eq.s32.totalorder %s48, 0
      %s51 = sadd.s32 %s50, 1
      %s52 = scalar_select %p49, %s50, %s51
      %p55 = pneg %p49
      %p56 = scmp.eq.s32.totalorder %s26, 1
      %p57 = por %p55, %p56
      %p58 = scmp.ne.s32.totalorder %s50, %s53
      %p59 = scmp.eq.s32.totalorder %s26, 0
      %p60 = por %p58, %p59
      %p61 = scmp.ne.s32.totalorder %s50, %s53
      %p62 = scmp.eq.s32.totalorder %s31, 1
      %p63 = por %p61, %p62
      %p64 = scmp.ne.s32.totalorder %s53, %s54
      %p65 = scmp.eq.s32.totalorder %s31, 0
      %p66 = por %p64, %p65
      %p67 = scmp.ne.s32.totalorder %s53, %s54
      %p68 = scmp.eq.s32.totalorder %s32, 1
      %p69 = por %p67, %p68
      %p71 = scmp.ne.s32.totalorder %s54, %s70
      %p72 = scmp.eq.s32.totalorder %s32, 0
      %p73 = por %p71, %p72
      %s74 = ssub.s32 %s33, %s45
      %p75 = scmp.eq.s32.totalorder %s74, 0
      %s77 = sadd.s32 %s76, 1
      %s78 = scalar_select %p75, %s76, %s77
      %p81 = pneg %p75
      %p82 = scmp.eq.s32.totalorder %s26, 1
      %p83 = por %p81, %p82
      %p84 = scmp.ne.s32.totalorder %s76, %s79
      %p85 = scmp.eq.s32.totalorder %s26, 0
      %p86 = por %p84, %p85
      %p87 = scmp.ne.s32.totalorder %s76, %s79
      %p88 = scmp.eq.s32.totalorder %s31, 1
      %p89 = por %p87, %p88
      %p90 = scmp.ne.s32.totalorder %s79, %s80
      %p91 = scmp.eq.s32.totalorder %s31, 0
      %p92 = por %p90, %p91
      %p93 = scmp.ne.s32.totalorder %s79, %s80
      %p94 = scmp.eq.s32.totalorder %s32, 1
      %p95 = por %p93, %p94
      %p97 = scmp.ne.s32.totalorder %s80, %s96
      %p98 = scmp.eq.s32.totalorder %s32, 0
      %p99 = por %p97, %p98
      %s100 = ssub.s32 %s33, %s45
      %p101 = scmp.eq.s32.totalorder %s100, 0
      %s103 = sadd.s32 %s102, 1
      %s104 = scalar_select %p101, %s102, %s103
      %p107 = pneg %p101
      %p108 = scmp.eq.s32.totalorder %s26, 1
      %p109 = por %p107, %p108
      %p110 = scmp.ne.s32.totalorder %s102, %s105
      %p111 = scmp.eq.s32.totalorder %s26, 0
      %p112 = por %p110, %p111
      %p113 = scmp.ne.s32.totalorder %s102, %s105
      %p114 = scmp.eq.s32.totalorder %s31, 1
      %p115 = por %p113, %p114
      %p116 = scmp.ne.s32.totalorder %s105, %s106
      %p117 = scmp.eq.s32.totalorder %s31, 0
      %p118 = por %p116, %p117
      %p119 = scmp.ne.s32.totalorder %s105, %s106
      %p120 = scmp.eq.s32.totalorder %s32, 1
      %p121 = por %p119, %p120
      %p123 = scmp.ne.s32.totalorder %s106, %s122
      %p124 = scmp.eq.s32.totalorder %s32, 0
      %p125 = por %p123, %p124
      %s126 = ssub.s32 %s34, %s41
      %p127 = scmp.eq.s32.totalorder %s126, 0
      %s129 = sadd.s32 %s128, 1
      %s130 = scalar_select %p127, %s128, %s129
      %p133 = pneg %p127
      %p134 = scmp.eq.s32.totalorder %s26, 1
      %p135 = por %p133, %p134
      %p136 = scmp.ne.s32.totalorder %s128, %s131
      %p137 = scmp.eq.s32.totalorder %s26, 0
      %p138 = por %p136, %p137
      %p139 = scmp.ne.s32.totalorder %s128, %s131
      %p140 = scmp.eq.s32.totalorder %s31, 1
      %p141 = por %p139, %p140
      %p142 = scmp.ne.s32.totalorder %s131, %s132
      %p143 = scmp.eq.s32.totalorder %s31, 0
      %p144 = por %p142, %p143
      %p145 = scmp.ne.s32.totalorder %s131, %s132
      %p146 = scmp.eq.s32.totalorder %s32, 1
      %p147 = por %p145, %p146
      %p149 = scmp.ne.s32.totalorder %s132, %s148
      %p150 = scmp.eq.s32.totalorder %s32, 0
      %p151 = por %p149, %p150
      %s153 = sadd.s32 %s152, 1
      %p156 = scmp.eq.s32.totalorder %s26, 1
      %p157 = scmp.ne.s32.totalorder %s152, %s154
      %p158 = scmp.eq.s32.totalorder %s26, 0
      %p159 = por %p157, %p158
      %p160 = scmp.ne.s32.totalorder %s152, %s154
      %p161 = scmp.eq.s32.totalorder %s31, 1
      %p162 = por %p160, %p161
      %p163 = scmp.ne.s32.totalorder %s154, %s155
      %p164 = scmp.eq.s32.totalorder %s31, 0
      %p165 = por %p163, %p164
      %p166 = scmp.ne.s32.totalorder %s154, %s155
      %p167 = scmp.eq.s32.totalorder %s32, 1
      %p168 = por %p166, %p167
      %p170 = scmp.ne.s32.totalorder %s155, %s169
      %p171 = scmp.eq.s32.totalorder %s32, 0
      %p172 = por %p170, %p171
      %s174 = sadd.s32 %s173, 1
      %p177 = scmp.eq.s32.totalorder %s26, 1
      %p178 = scmp.ne.s32.totalorder %s173, %s175
      %p179 = scmp.eq.s32.totalorder %s26, 0
      %p180 = por %p178, %p179
      %p181 = scmp.ne.s32.totalorder %s173, %s175
      %p182 = scmp.eq.s32.totalorder %s31, 1
      %p183 = por %p181, %p182
      %p184 = scmp.ne.s32.totalorder %s175, %s176
      %p185 = scmp.eq.s32.totalorder %s31, 0
      %p186 = por %p184, %p185
      %p187 = scmp.ne.s32.totalorder %s175, %s176
      %p188 = scmp.eq.s32.totalorder %s32, 1
      %p189 = por %p187, %p188
      %p191 = scmp.ne.s32.totalorder %s176, %s190
      %p192 = scmp.eq.s32.totalorder %s32, 0
      %p193 = por %p191, %p192
      %s195 = sadd.s32 %s194, 1
      %p198 = scmp.eq.s32.totalorder %s26, 1
      %p199 = scmp.ne.s32.totalorder %s194, %s196
      %p200 = scmp.eq.s32.totalorder %s26, 0
      %p201 = por %p199, %p200
      %p202 = scmp.ne.s32.totalorder %s194, %s196
      %p203 = scmp.eq.s32.totalorder %s31, 1
      %p204 = por %p202, %p203
      %p205 = scmp.ne.s32.totalorder %s196, %s197
      %p206 = scmp.eq.s32.totalorder %s31, 0
      %p207 = por %p205, %p206
      %p208 = scmp.ne.s32.totalorder %s196, %s197
      %p209 = scmp.eq.s32.totalorder %s32, 1
      %p210 = por %p208, %p209
      %p212 = scmp.ne.s32.totalorder %s197, %s211
      %p213 = scmp.eq.s32.totalorder %s32, 0
      %p214 = por %p212, %p213
      %s216 = sadd.s32 %s215, 1
      %p219 = scmp.eq.s32.totalorder %s26, 1
      %p220 = scmp.ne.s32.totalorder %s215, %s217
      %p221 = scmp.eq.s32.totalorder %s26, 0
      %p222 = por %p220, %p221
      %p223 = scmp.ne.s32.totalorder %s215, %s217
      %p224 = scmp.eq.s32.totalorder %s31, 1
      %p225 = por %p223, %p224
      %p226 = scmp.ne.s32.totalorder %s217, %s218
      %p227 = scmp.eq.s32.totalorder %s31, 0
      %p228 = por %p226, %p227
      %p229 = scmp.ne.s32.totalorder %s217, %s218
      %p230 = scmp.eq.s32.totalorder %s32, 1
      %p231 = por %p229, %p230
      %p233 = scmp.ne.s32.totalorder %s218, %s232
      %p234 = scmp.eq.s32.totalorder %s32, 0
      %p235 = por %p233, %p234
      %s237 = sadd.s32 %s236, 1
      %p240 = scmp.eq.s32.totalorder %s26, 1
      %p241 = scmp.ne.s32.totalorder %s236, %s238
      %p242 = scmp.eq.s32.totalorder %s26, 0
      %p243 = por %p241, %p242
      %p244 = scmp.ne.s32.totalorder %s236, %s238
      %p245 = scmp.eq.s32.totalorder %s31, 1
      %p246 = por %p244, %p245
      %p247 = scmp.ne.s32.totalorder %s238, %s239
      %p248 = scmp.eq.s32.totalorder %s31, 0
      %p249 = por %p247, %p248
      %p250 = scmp.ne.s32.totalorder %s238, %s239
      %p251 = scmp.eq.s32.totalorder %s32, 1
      %p252 = por %p250, %p251
      %p254 = scmp.ne.s32.totalorder %s239, %s253
      %p255 = scmp.eq.s32.totalorder %s32, 0
      %p256 = por %p254, %p255
      %s257 = ssub.s32 %s33, %s45
      %s258 = ssub.s32 %s34, %s41
      %s259 = sor.u32 %s257, %s258
      %p260 = scmp.eq.s32.totalorder %s259, 0
      %s262 = sadd.s32 %s261, 1
      %s263 = scalar_select %p260, %s261, %s262
      %p266 = pneg %p260
      %p267 = scmp.eq.s32.totalorder %s26, 1
      %p268 = por %p266, %p267
      %p269 = scmp.ne.s32.totalorder %s261, %s264
      %p270 = scmp.eq.s32.totalorder %s26, 0
      %p271 = por %p269, %p270
      %p272 = scmp.ne.s32.totalorder %s261, %s264
      %p273 = scmp.eq.s32.totalorder %s31, 1
      %p274 = por %p272, %p273
      %p275 = scmp.ne.s32.totalorder %s264, %s265
      %p276 = scmp.eq.s32.totalorder %s31, 0
      %p277 = por %p275, %p276
      %p278 = scmp.ne.s32.totalorder %s264, %s265
      %p279 = scmp.eq.s32.totalorder %s32, 1
      %p280 = por %p278, %p279
      %p282 = scmp.ne.s32.totalorder %s265, %s281
      %p283 = scmp.eq.s32.totalorder %s32, 0
      %p284 = por %p282, %p283
      %p285 = scmp.le.s32.totalorder 1, %s26
      %p286 = scmp.lt.s32.totalorder %s26, 3
      %p287 = pnand %p285, %p286
      %p288 = pneg %p287
      // Predicated region
      $region9: #{tpu_custom_call.1} parent=5 // pred_check
        _
      $region10: #{tpu_custom_call.1} parent=5 // pred_check_branch
        %290 = sbr.rel (%p287) target = $region12
      $region11: #{tpu_custom_call.1} parent=5 // pred_region
        %s291 = ssub.s32 %s26, 1
        // Predicated region
        $region13: #{tpu_custom_call.1} parent=11 // pred_check
          %p292 = pneg %p144
        $region14: #{tpu_custom_call.1} parent=11 // pred_check_branch
          %294 = sbr.rel (%p292) target = $region16
        $region15: #{tpu_custom_call.1} parent=11 // pred_region
          %p295 = scmp.lt.s32.totalorder %s36, 0
          %s296 = scalar_select %p295, %s36, 0
          %s297 = smul.addr %s296, 8
          %s298 = scalar_lea.vmem %s3, %s297
        $region16: #{tpu_custom_call.1} parent=11 // pred_fallthru
          _
        // Predicated region
        $region17: #{tpu_custom_call.1} parent=11 // pred_check
          %p299 = pneg %p165
        $region18: #{tpu_custom_call.1} parent=11 // pred_check_branch
          %301 = sbr.rel (%p299) target = $region20
        $region19: #{tpu_custom_call.1} parent=11 // pred_region
          %s303 = ssub.s32 512, 512
          %304 = vsyncadd [#allocation13], %s303
          %s305 = sshll.u32 [#allocation12], 4
          %s306 = int_to_ptr.vmem [resolvable:$true] %s305
          %311 = dma.hbm_to_vmem [thread:$0]  %s4, 512, %s306, [#allocation13], 128, 128, 8
        $region20: #{tpu_custom_call.1} parent=11 // pred_fallthru
          _
        // Predicated region
        $region21: #{tpu_custom_call.1} parent=11 // pred_check
          %p312 = pneg %p186
        $region22: #{tpu_custom_call.1} parent=11 // pred_check_branch
          %314 = sbr.rel (%p312) target = $region24
        $region23: #{tpu_custom_call.1} parent=11 // pred_region
          %s316 = ssub.s32 512, 512
          %317 = vsyncadd [#allocation13], %s316
          %s318 = sshll.u32 [#allocation14], 4
          %s319 = int_to_ptr.vmem [resolvable:$true] %s318
          %324 = dma.hbm_to_vmem [thread:$0]  %s5, 512, %s319, [#allocation13], 128, 128, 8
        $region24: #{tpu_custom_call.1} parent=11 // pred_fallthru
          _
        // Predicated region
        $region25: #{tpu_custom_call.1} parent=11 // pred_check
          %p325 = pneg %p207
        $region26: #{tpu_custom_call.1} parent=11 // pred_check_branch
          %327 = sbr.rel (%p325) target = $region28
        $region27: #{tpu_custom_call.1} parent=11 // pred_region
          %s329 = ssub.s32 512, 512
          %330 = vsyncadd [#allocation16], %s329
          %s331 = sshll.u32 [#allocation15], 4
          %s332 = int_to_ptr.vmem [resolvable:$true] %s331
          %337 = dma.hbm_to_vmem [thread:$0]  %s6, 512, %s332, [#allocation16], 128, 128, 8
        $region28: #{tpu_custom_call.1} parent=11 // pred_fallthru
          _
        // Predicated region
        $region29: #{tpu_custom_call.1} parent=11 // pred_check
          %p338 = pneg %p228
        $region30: #{tpu_custom_call.1} parent=11 // pred_check_branch
          %340 = sbr.rel (%p338) target = $region32
        $region31: #{tpu_custom_call.1} parent=11 // pred_region
          %s342 = ssub.s32 512, 512
          %343 = vsyncadd [#allocation16], %s342
          %s344 = sshll.u32 [#allocation17], 4
          %s345 = int_to_ptr.vmem [resolvable:$true] %s344
          %350 = dma.hbm_to_vmem [thread:$0]  %s7, 512, %s345, [#allocation16], 128, 128, 8
        $region32: #{tpu_custom_call.1} parent=11 // pred_fallthru
          _
        // Predicated region
        $region33: #{tpu_custom_call.1} parent=11 // pred_check
          %p351 = pneg %p249
        $region34: #{tpu_custom_call.1} parent=11 // pred_check_branch
          %353 = sbr.rel (%p351) target = $region36
        $region35: #{tpu_custom_call.1} parent=11 // pred_region
          _
        $region36: #{tpu_custom_call.1} parent=11 // pred_fallthru
          _
      $region12: #{tpu_custom_call.1} parent=5 // pred_fallthru
        _
      %p354 = scmp.lt.s32.totalorder %s26, 2
      // Predicated region
      $region37: #{tpu_custom_call.1} parent=5 // pred_check
        %p355 = pneg %p354
      $region38: #{tpu_custom_call.1} parent=5 // pred_check_branch
        %357 = sbr.rel (%p355) target = $region40
      $region39: #{tpu_custom_call.1} parent=5 // pred_region
        // Predicated region
        $region41: #{tpu_custom_call.1} parent=39 // pred_check
          %p358 = pneg %p60
        $region42: #{tpu_custom_call.1} parent=39 // pred_check_branch
          %360 = sbr.rel (%p358) target = $region44
        $region43: #{tpu_custom_call.1} parent=39 // pred_region
          %s361 = sand.u32 %s50, 1
          %s362 = scalar_lea.sflag [#allocation7], %s361
          %s363 = sand.u32 %s50, 1
          %s364 = smul.addr %s363, 8
          %s365 = scalar_lea.vmem [#allocation6], %s364
          %s367 = ssub.s32 128, 128
          %368 = vsyncadd %s362, %s367
          %s369 = sadd.s32 %s34, %s33
          %s370 = smul.addr %s369, 128
          %s371 = scalar_lea.hbm %s0, %s370
          %s373 = sshll.u32 %s365, 4
          %s374 = int_to_ptr.vmem [resolvable:$true] %s373
          %376 = dma.hbm_to_vmem [thread:$0]  %s371, 128, %s374, %s362
        $region44: #{tpu_custom_call.1} parent=39 // pred_fallthru
          _
        // Predicated region
        $region45: #{tpu_custom_call.1} parent=39 // pred_check
          %p377 = pneg %p86
        $region46: #{tpu_custom_call.1} parent=39 // pred_check_branch
          %379 = sbr.rel (%p377) target = $region48
        $region47: #{tpu_custom_call.1} parent=39 // pred_region
          %s380 = sand.u32 %s26, 1
          %s381 = scalar_lea.sflag [#allocation10], %s380
          %s382 = sand.u32 %s76, 1
          %s383 = smul.addr %s382, 8
          %s384 = scalar_lea.vmem [#allocation9], %s383
          %s386 = ssub.s32 128, 128
          %387 = vsyncadd %s381, %s386
          %s388 = smul.addr %s33, 128
          %s389 = scalar_lea.hbm %s1, %s388
          %s391 = sshll.u32 %s384, 4
          %s392 = int_to_ptr.vmem [resolvable:$true] %s391
          %394 = dma.hbm_to_vmem [thread:$0]  %s389, 128, %s392, %s381
        $region48: #{tpu_custom_call.1} parent=39 // pred_fallthru
          _
        // Predicated region
        $region49: #{tpu_custom_call.1} parent=39 // pred_check
          %p395 = pneg %p112
        $region50: #{tpu_custom_call.1} parent=39 // pred_check_branch
          %397 = sbr.rel (%p395) target = $region52
        $region51: #{tpu_custom_call.1} parent=39 // pred_region
          %s398 = sand.u32 %s26, 1
          %s399 = scalar_lea.sflag [#allocation10], %s398
          %s400 = sand.u32 %s102, 1
          %s401 = smul.addr %s400, 8
          %s402 = scalar_lea.vmem [#allocation11], %s401
          %s404 = ssub.s32 128, 128
          %405 = vsyncadd %s399, %s404
          %s406 = smul.addr %s33, 128
          %s407 = scalar_lea.hbm %s2, %s406
          %s409 = sshll.u32 %s402, 4
          %s410 = int_to_ptr.vmem [resolvable:$true] %s409
          %412 = dma.hbm_to_vmem [thread:$0]  %s407, 128, %s410, %s399
        $region52: #{tpu_custom_call.1} parent=39 // pred_fallthru
          _
      $region40: #{tpu_custom_call.1} parent=5 // pred_fallthru
        _
      %p413 = scmp.le.s32.totalorder 1, %s26
      %p414 = scmp.lt.s32.totalorder %s26, 3
      %p415 = pnand %p413, %p414
      %p416 = pneg %p415
      // Predicated region
      $region53: #{tpu_custom_call.1} parent=5 // pred_check
        _
      $region54: #{tpu_custom_call.1} parent=5 // pred_check_branch
        %418 = sbr.rel (%p415) target = $region56
      $region55: #{tpu_custom_call.1} parent=5 // pred_region
        %s419 = ssub.s32 %s26, 1
        %s420 = sand.u32 %s53, 1
        %s421 = scalar_lea.sflag [#allocation7], %s420
        %s422 = sand.u32 %s53, 1
        %s423 = smul.addr %s422, 8
        %s424 = scalar_lea.vmem [#allocation6], %s423
        // Predicated region
        $region57: #{tpu_custom_call.1} parent=55 // pred_check
          %p425 = pneg %p66
        $region58: #{tpu_custom_call.1} parent=55 // pred_check_branch
          %427 = sbr.rel (%p425) target = $region60
        $region59: #{tpu_custom_call.1} parent=55 // pred_region
          %428 = dma.done %s421, 128
        $region60: #{tpu_custom_call.1} parent=55 // pred_fallthru
          _
        %s429 = sand.u32 %s31, 1
        %s430 = scalar_lea.sflag [#allocation10], %s429
        %s431 = sand.u32 %s79, 1
        %s432 = smul.addr %s431, 8
        %s433 = scalar_lea.vmem [#allocation9], %s432
        // Predicated region
        $region61: #{tpu_custom_call.1} parent=55 // pred_check
          %p434 = pneg %p92
        $region62: #{tpu_custom_call.1} parent=55 // pred_check_branch
          %436 = sbr.rel (%p434) target = $region64
        $region63: #{tpu_custom_call.1} parent=55 // pred_region
          %437 = dma.done %s430, 128
        $region64: #{tpu_custom_call.1} parent=55 // pred_fallthru
          _
        %s438 = sand.u32 %s31, 1
        %s439 = scalar_lea.sflag [#allocation10], %s438
        %s440 = sand.u32 %s105, 1
        %s441 = smul.addr %s440, 8
        %s442 = scalar_lea.vmem [#allocation11], %s441
        // Predicated region
        $region65: #{tpu_custom_call.1} parent=55 // pred_check
          %p443 = pneg %p118
        $region66: #{tpu_custom_call.1} parent=55 // pred_check_branch
          %445 = sbr.rel (%p443) target = $region68
        $region67: #{tpu_custom_call.1} parent=55 // pred_region
          %446 = dma.done %s439, 128
        $region68: #{tpu_custom_call.1} parent=55 // pred_fallthru
          _
        // Predicated region
        $region69: #{tpu_custom_call.1} parent=55 // pred_check
          %p447 = pneg %p165
        $region70: #{tpu_custom_call.1} parent=55 // pred_check_branch
          %449 = sbr.rel (%p447) target = $region72
        $region71: #{tpu_custom_call.1} parent=55 // pred_region
          %450 = dma.done [#allocation13], 512
        $region72: #{tpu_custom_call.1} parent=55 // pred_fallthru
          _
        // Predicated region
        $region73: #{tpu_custom_call.1} parent=55 // pred_check
          %p451 = pneg %p186
        $region74: #{tpu_custom_call.1} parent=55 // pred_check_branch
          %453 = sbr.rel (%p451) target = $region76
        $region75: #{tpu_custom_call.1} parent=55 // pred_region
          %454 = dma.done [#allocation13], 512
        $region76: #{tpu_custom_call.1} parent=55 // pred_fallthru
          _
        // Predicated region
        $region77: #{tpu_custom_call.1} parent=55 // pred_check
          %p455 = pneg %p207
        $region78: #{tpu_custom_call.1} parent=55 // pred_check_branch
          %457 = sbr.rel (%p455) target = $region80
        $region79: #{tpu_custom_call.1} parent=55 // pred_region
          %458 = dma.done [#allocation16], 512
        $region80: #{tpu_custom_call.1} parent=55 // pred_fallthru
          _
        // Predicated region
        $region81: #{tpu_custom_call.1} parent=55 // pred_check
          %p459 = pneg %p228
        $region82: #{tpu_custom_call.1} parent=55 // pred_check_branch
          %461 = sbr.rel (%p459) target = $region84
        $region83: #{tpu_custom_call.1} parent=55 // pred_region
          %462 = dma.done [#allocation16], 512
        $region84: #{tpu_custom_call.1} parent=55 // pred_fallthru
          _
        %s463 = sand.u32 %s53, 1
        %s464 = scalar_lea.sflag [#allocation7], %s463
        %s465 = sand.u32 %s53, 1
        %s466 = smul.addr %s465, 8
        %s467 = scalar_lea.vmem [#allocation6], %s466
        %p468 = pneg %p66
        %p469 = pneg %p63
        %s470 = sand.u32 %s31, 1
        %s471 = scalar_lea.sflag [#allocation10], %s470
        %s472 = sand.u32 %s79, 1
        %s473 = smul.addr %s472, 8
        %s474 = scalar_lea.vmem [#allocation9], %s473
        %p475 = pneg %p92
        %p476 = pneg %p89
        %s477 = sand.u32 %s31, 1
        %s478 = scalar_lea.sflag [#allocation10], %s477
        %s479 = sand.u32 %s105, 1
        %s480 = smul.addr %s479, 8
        %s481 = scalar_lea.vmem [#allocation11], %s480
        %p482 = pneg %p118
        %p483 = pneg %p115
        %p484 = scmp.lt.s32.totalorder %s36, 0
        %s485 = scalar_select %p484, %s36, 0
        %s486 = smul.addr %s485, 8
        %s487 = scalar_lea.vmem %s3, %s486
        %p488 = pneg %p144
        %p489 = pneg %p141
        %p490 = pneg %p165
        %p491 = pneg %p162
        %p492 = pneg %p186
        %p493 = pneg %p183
        %p494 = pneg %p207
        %p495 = pneg %p204
        %p496 = pneg %p228
        %p497 = pneg %p225
        %p498 = pneg %p249
        %p499 = pneg %p246
        %p500 = pneg %p277
        %p501 = pneg %p274
        %s502 = sand.u32 %s264, 1
        %s503 = scalar_lea.sflag [#allocation8], %s502
        %s504 = sand.u32 %s264, 1
        %s505 = smul.addr %s504, 8
        %s506 = scalar_lea.vmem [#allocation18], %s505
        %p507 = scmp.lt.s32.totalorder %s36, 0
        %s508 = scalar_select %p507, %s36, 0
        %s509 = smul.addr %s508, 8
        %s510 = scalar_lea.vmem %s3, %s509
        %v511 = vld [vmem:[%s424] sm:$0xff]
        %v512 = vld [vmem:[#allocation12] sm:$0xff]
        %v513 = vld [vmem:[#allocation12 + $0x8] sm:$0xff]
        %v514 = vld [vmem:[#allocation12 + $0x10] sm:$0xff]
        %v515 = vld [vmem:[#allocation12 + $0x18] sm:$0xff]
        %vm516 = vcmask 261120
        %v518 = vsel %vm516, %v511, 0
        %520 = vmatprep.subr.mxu0 0.0
        %521 = vmatpush1.msra.mxu0 %v512
        %522 = vmatprep.subr.mxu0 0.0
        %523 = vmatpush1.msra.mxu0 %v513
        %524 = vmatprep.subr.mxu0 0.0
        %525 = vmatpush1.msra.mxu0 %v514
        %526 = vmatprep.subr.mxu0 0.0
        %527 = vmatpush1.msra.mxu0 %v515
        %528 = vmatprep.subr.mxu0 0.0
        %529 = vmatpush1.msra.mxu0 0.0
        %530 = vmatprep.subr.mxu0 0.0
        %531 = vmatpush1.msra.mxu0 0.0
        %532 = vmatprep.subr.mxu0 0.0
        %533 = vmatpush1.msra.mxu0 0.0
        %534 = vmatprep.subr.mxu0 0.0
        %535 = vmatpush1.msra.mxu0 0.0
        %536 = vmatprep.subr.mxu0 0.0
        %537 = vmatpush1.msra.mxu0 0.0
        %538 = vmatprep.subr.mxu0 0.0
        %539 = vmatpush1.msra.mxu0 0.0
        %540 = vmatprep.subr.mxu0 0.0
        %541 = vmatpush1.msra.mxu0 0.0
        %542 = vmatprep.subr.mxu0 0.0
        %543 = vmatpush1.msra.mxu0 0.0
        %544 = vmatprep.subr.mxu0 0.0
        %545 = vmatpush1.msra.mxu0 0.0
        %546 = vmatprep.subr.mxu0 0.0
        %547 = vmatpush1.msra.mxu0 0.0
        %548 = vmatprep.subr.mxu0 0.0
        %549 = vmatpush1.msra.mxu0 0.0
        %550 = vmatprep.subr.mxu0 0.0
        %551 = vmatpush1.msra.mxu0 0.0
        %552 = vmatprep.subr.mxu0 0.0
        %553 = vmatpush1.msra.mxu0 0.0
        %554 = vmatprep.subr.mxu0 0.0
        %555 = vmatpush1.msra.mxu0 0.0
        %556 = vmatprep.subr.mxu0 0.0
        %557 = vmatpush1.msra.mxu0 0.0
        %558 = vmatprep.subr.mxu0 0.0
        %559 = vmatpush1.msra.mxu0 0.0
        %560 = vmatprep.subr.mxu0 0.0
        %561 = vmatpush1.msra.mxu0 0.0
        %562 = vmatprep.subr.mxu0 0.0
        %563 = vmatpush1.msra.mxu0 0.0
        %564 = vmatprep.subr.mxu0 0.0
        %565 = vmatpush1.msra.mxu0 0.0
        %566 = vmatprep.subr.mxu0 0.0
        %567 = vmatpush1.msra.mxu0 0.0
        %568 = vmatprep.subr.mxu0 0.0
        %569 = vmatpush1.msra.mxu0 0.0
        %570 = vmatprep.subr.mxu0 0.0
        %571 = vmatpush1.msra.mxu0 0.0
        %572 = vmatprep.subr.mxu0 0.0
        %573 = vmatpush1.msra.mxu0 0.0
        %574 = vmatprep.subr.mxu0 0.0
        %575 = vmatpush1.msra.mxu0 0.0
        %576 = vmatprep.subr.mxu0 0.0
        %577 = vmatpush1.msra.mxu0 0.0
        %578 = vmatprep.subr.mxu0 0.0
        %579 = vmatpush1.msra.mxu0 0.0
        %580 = vmatprep.subr.mxu0 0.0
        %581 = vmatpush1.msra.mxu0 0.0
        %582 = vmatprep.subr.mxu0 0.0
        %583 = vmatpush1.msra.mxu0 0.0
        %584 = vmatprep.mubr.f32.mxu0 0.0
        %585 = vmatmul.mubr.f32.gmra.mrb[0].mxu0 %v518
        %v586 = vpop.f32.mrb[0].mxu0
        %v587 = vadd.f32 0.0, %v586
        %v588 = vpop.f32.mrb[0].mxu0
        %589 = vdwg.mxu0
        %v590 = vld [vmem:[%s433] sm:$0xff]
        %v591 = vld [vmem:[#allocation14] sm:$0xff]
        %v592 = vld [vmem:[#allocation14 + $0x8] sm:$0xff]
        %v593 = vld [vmem:[#allocation14 + $0x10] sm:$0xff]
        %v594 = vld [vmem:[#allocation14 + $0x18] sm:$0xff]
        %v596 = vsel %vm516, %v590, 0
        %598 = vmatprep.subr.mxu0 0.0
        %599 = vmatpush1.msra.mxu0 %v591
        %600 = vmatprep.subr.mxu0 0.0
        %601 = vmatpush1.msra.mxu0 %v592
        %602 = vmatprep.subr.mxu0 0.0
        %603 = vmatpush1.msra.mxu0 %v593
        %604 = vmatprep.subr.mxu0 0.0
        %605 = vmatpush1.msra.mxu0 %v594
        %606 = vmatprep.subr.mxu0 0.0
        %607 = vmatpush1.msra.mxu0 0.0
        %608 = vmatprep.subr.mxu0 0.0
        %609 = vmatpush1.msra.mxu0 0.0
        %610 = vmatprep.subr.mxu0 0.0
        %611 = vmatpush1.msra.mxu0 0.0
        %612 = vmatprep.subr.mxu0 0.0
        %613 = vmatpush1.msra.mxu0 0.0
        %614 = vmatprep.subr.mxu0 0.0
        %615 = vmatpush1.msra.mxu0 0.0
        %616 = vmatprep.subr.mxu0 0.0
        %617 = vmatpush1.msra.mxu0 0.0
        %618 = vmatprep.subr.mxu0 0.0
        %619 = vmatpush1.msra.mxu0 0.0
        %620 = vmatprep.subr.mxu0 0.0
        %621 = vmatpush1.msra.mxu0 0.0
        %622 = vmatprep.subr.mxu0 0.0
        %623 = vmatpush1.msra.mxu0 0.0
        %624 = vmatprep.subr.mxu0 0.0
        %625 = vmatpush1.msra.mxu0 0.0
        %626 = vmatprep.subr.mxu0 0.0
        %627 = vmatpush1.msra.mxu0 0.0
        %628 = vmatprep.subr.mxu0 0.0
        %629 = vmatpush1.msra.mxu0 0.0
        %630 = vmatprep.subr.mxu0 0.0
        %631 = vmatpush1.msra.mxu0 0.0
        %632 = vmatprep.subr.mxu0 0.0
        %633 = vmatpush1.msra.mxu0 0.0
        %634 = vmatprep.subr.mxu0 0.0
        %635 = vmatpush1.msra.mxu0 0.0
        %636 = vmatprep.subr.mxu0 0.0
        %637 = vmatpush1.msra.mxu0 0.0
        %638 = vmatprep.subr.mxu0 0.0
        %639 = vmatpush1.msra.mxu0 0.0
        %640 = vmatprep.subr.mxu0 0.0
        %641 = vmatpush1.msra.mxu0 0.0
        %642 = vmatprep.subr.mxu0 0.0
        %643 = vmatpush1.msra.mxu0 0.0
        %644 = vmatprep.subr.mxu0 0.0
        %645 = vmatpush1.msra.mxu0 0.0
        %646 = vmatprep.subr.mxu0 0.0
        %647 = vmatpush1.msra.mxu0 0.0
        %648 = vmatprep.subr.mxu0 0.0
        %649 = vmatpush1.msra.mxu0 0.0
        %650 = vmatprep.subr.mxu0 0.0
        %651 = vmatpush1.msra.mxu0 0.0
        %652 = vmatprep.subr.mxu0 0.0
        %653 = vmatpush1.msra.mxu0 0.0
        %654 = vmatprep.subr.mxu0 0.0
        %655 = vmatpush1.msra.mxu0 0.0
        %656 = vmatprep.subr.mxu0 0.0
        %657 = vmatpush1.msra.mxu0 0.0
        %658 = vmatprep.subr.mxu0 0.0
        %659 = vmatpush1.msra.mxu0 0.0
        %660 = vmatprep.subr.mxu0 0.0
        %661 = vmatpush1.msra.mxu0 0.0
        %662 = vmatprep.mubr.f32.mxu0 0.0
        %663 = vmatmul.mubr.f32.gmra.mrb[0].mxu0 %v596
        %v664 = vpop.f32.mrb[0].mxu0
        %v665 = vadd.f32 0.0, %v664
        %v666 = vpop.f32.mrb[0].mxu0
        %667 = vdwg.mxu0
        %v668 = vld [vmem:[%s442] sm:$0xff]
        %v669 = vld [vmem:[#allocation15] sm:$0xff]
        %v670 = vld [vmem:[#allocation15 + $0x8] sm:$0xff]
        %v671 = vld [vmem:[#allocation15 + $0x10] sm:$0xff]
        %v672 = vld [vmem:[#allocation15 + $0x18] sm:$0xff]
        %v674 = vsel %vm516, %v668, 0
        %676 = vmatprep.subr.mxu0 0.0
        %677 = vmatpush1.msra.mxu0 %v669
        %678 = vmatprep.subr.mxu0 0.0
        %679 = vmatpush1.msra.mxu0 %v670
        %680 = vmatprep.subr.mxu0 0.0
        %681 = vmatpush1.msra.mxu0 %v671
        %682 = vmatprep.subr.mxu0 0.0
        %683 = vmatpush1.msra.mxu0 %v672
        %684 = vmatprep.subr.mxu0 0.0
        %685 = vmatpush1.msra.mxu0 0.0
        %686 = vmatprep.subr.mxu0 0.0
        %687 = vmatpush1.msra.mxu0 0.0
        %688 = vmatprep.subr.mxu0 0.0
        %689 = vmatpush1.msra.mxu0 0.0
        %690 = vmatprep.subr.mxu0 0.0
        %691 = vmatpush1.msra.mxu0 0.0
        %692 = vmatprep.subr.mxu0 0.0
        %693 = vmatpush1.msra.mxu0 0.0
        %694 = vmatprep.subr.mxu0 0.0
        %695 = vmatpush1.msra.mxu0 0.0
        %696 = vmatprep.subr.mxu0 0.0
        %697 = vmatpush1.msra.mxu0 0.0
        %698 = vmatprep.subr.mxu0 0.0
        %699 = vmatpush1.msra.mxu0 0.0
        %700 = vmatprep.subr.mxu0 0.0
        %701 = vmatpush1.msra.mxu0 0.0
        %702 = vmatprep.subr.mxu0 0.0
        %703 = vmatpush1.msra.mxu0 0.0
        %704 = vmatprep.subr.mxu0 0.0
        %705 = vmatpush1.msra.mxu0 0.0
        %706 = vmatprep.subr.mxu0 0.0
        %707 = vmatpush1.msra.mxu0 0.0
        %708 = vmatprep.subr.mxu0 0.0
        %709 = vmatpush1.msra.mxu0 0.0
        %710 = vmatprep.subr.mxu0 0.0
        %711 = vmatpush1.msra.mxu0 0.0
        %712 = vmatprep.subr.mxu0 0.0
        %713 = vmatpush1.msra.mxu0 0.0
        %714 = vmatprep.subr.mxu0 0.0
        %715 = vmatpush1.msra.mxu0 0.0
        %716 = vmatprep.subr.mxu0 0.0
        %717 = vmatpush1.msra.mxu0 0.0
        %718 = vmatprep.subr.mxu0 0.0
        %719 = vmatpush1.msra.mxu0 0.0
        %720 = vmatprep.subr.mxu0 0.0
        %721 = vmatpush1.msra.mxu0 0.0
        %722 = vmatprep.subr.mxu0 0.0
        %723 = vmatpush1.msra.mxu0 0.0
        %724 = vmatprep.subr.mxu0 0.0
        %725 = vmatpush1.msra.mxu0 0.0
        %726 = vmatprep.subr.mxu0 0.0
        %727 = vmatpush1.msra.mxu0 0.0
        %728 = vmatprep.subr.mxu0 0.0
        %729 = vmatpush1.msra.mxu0 0.0
        %730 = vmatprep.subr.mxu0 0.0
        %731 = vmatpush1.msra.mxu0 0.0
        %732 = vmatprep.subr.mxu0 0.0
        %733 = vmatpush1.msra.mxu0 0.0
        %734 = vmatprep.subr.mxu0 0.0
        %735 = vmatpush1.msra.mxu0 0.0
        %736 = vmatprep.subr.mxu0 0.0
        %737 = vmatpush1.msra.mxu0 0.0
        %738 = vmatprep.subr.mxu0 0.0
        %739 = vmatpush1.msra.mxu0 0.0
        %740 = vmatprep.mubr.f32.mxu0 0.0
        %741 = vmatmul.mubr.f32.gmra.mrb[0].mxu0 %v674
        %v742 = vpop.f32.mrb[0].mxu0
        %v743 = vadd.f32 0.0, %v742
        %v744 = vpop.f32.mrb[0].mxu0
        %745 = vdwg.mxu0
        %vm746 = vcmask 130048
        %747 = vst.msk [vmem:[#allocation2] sm:$0xff] %vm746, %v587
        %748 = vst.msk [vmem:[#allocation3] sm:$0xff] %vm746, %v665
        %749 = vst.msk [vmem:[#allocation4] sm:$0xff] %vm746, %v743
        %751 = vrot.lane.b32.xlu0 %v587, 112
        %v752 = vpop.permute.xlu0 %751
        %s754 = scalar_lea.vmem [#allocation2], 8
        %755 = vst.msk [vmem:[%s754] sm:$0xff] %vm746, %v752
        %757 = vrot.lane.b32.xlu0 %v665, 112
        %v758 = vpop.permute.xlu0 %757
        %s760 = scalar_lea.vmem [#allocation3], 8
        %761 = vst.msk [vmem:[%s760] sm:$0xff] %vm746, %v758
        %763 = vrot.lane.b32.xlu0 %v743, 112
        %v764 = vpop.permute.xlu0 %763
        %s766 = scalar_lea.vmem [#allocation4], 8
        %767 = vst.msk [vmem:[%s766] sm:$0xff] %vm746, %v764
        %v768 = vld [vmem:[%s510] sm:$0xff]
        %v769 = vld [vmem:[#allocation2] sm:$0xff]
        %v770 = vld [vmem:[#allocation3] sm:$0xff]
        %v771 = vld [vmem:[#allocation4] sm:$0xff]
        %v773 = vsel %vm746, %v769, 0
        %v776 = vsel %vm746, %v770, 0
        %778 = vmatprep.subr.mxu0 0.0
        %779 = vmatpush1.xpose.msra.mxu0 %v776
        %780 = vmatprep.subr.mxu0 0.0
        %781 = vmatpush1.xpose.msra.mxu0 0.0
        %782 = vmatprep.subr.mxu0 0.0
        %783 = vmatpush1.xpose.msra.mxu0 0.0
        %784 = vmatprep.subr.mxu0 0.0
        %785 = vmatpush1.xpose.msra.mxu0 0.0
        %786 = vmatprep.subr.mxu0 0.0
        %787 = vmatpush1.xpose.msra.mxu0 0.0
        %788 = vmatprep.subr.mxu0 0.0
        %789 = vmatpush1.xpose.msra.mxu0 0.0
        %790 = vmatprep.subr.mxu0 0.0
        %791 = vmatpush1.xpose.msra.mxu0 0.0
        %792 = vmatprep.subr.mxu0 0.0
        %793 = vmatpush1.xpose.msra.mxu0 0.0
        %794 = vmatprep.subr.mxu0 0.0
        %795 = vmatpush1.xpose.msra.mxu0 0.0
        %796 = vmatprep.subr.mxu0 0.0
        %797 = vmatpush1.xpose.msra.mxu0 0.0
        %798 = vmatprep.subr.mxu0 0.0
        %799 = vmatpush1.xpose.msra.mxu0 0.0
        %800 = vmatprep.subr.mxu0 0.0
        %801 = vmatpush1.xpose.msra.mxu0 0.0
        %802 = vmatprep.subr.mxu0 0.0
        %803 = vmatpush1.xpose.msra.mxu0 0.0
        %804 = vmatprep.subr.mxu0 0.0
        %805 = vmatpush1.xpose.msra.mxu0 0.0
        %806 = vmatprep.subr.mxu0 0.0
        %807 = vmatpush1.xpose.msra.mxu0 0.0
        %808 = vmatprep.subr.mxu0 0.0
        %809 = vmatpush1.xpose.msra.mxu0 0.0
        %810 = vmatprep.subr.mxu0 0.0
        %811 = vmatpush1.xpose.msra.mxu0 0.0
        %812 = vmatprep.subr.mxu0 0.0
        %813 = vmatpush1.xpose.msra.mxu0 0.0
        %814 = vmatprep.subr.mxu0 0.0
        %815 = vmatpush1.xpose.msra.mxu0 0.0
        %816 = vmatprep.subr.mxu0 0.0
        %817 = vmatpush1.xpose.msra.mxu0 0.0
        %818 = vmatprep.subr.mxu0 0.0
        %819 = vmatpush1.xpose.msra.mxu0 0.0
        %820 = vmatprep.subr.mxu0 0.0
        %821 = vmatpush1.xpose.msra.mxu0 0.0
        %822 = vmatprep.subr.mxu0 0.0
        %823 = vmatpush1.xpose.msra.mxu0 0.0
        %824 = vmatprep.subr.mxu0 0.0
        %825 = vmatpush1.xpose.msra.mxu0 0.0
        %826 = vmatprep.subr.mxu0 0.0
        %827 = vmatpush1.xpose.msra.mxu0 0.0
        %828 = vmatprep.subr.mxu0 0.0
        %829 = vmatpush1.xpose.msra.mxu0 0.0
        %830 = vmatprep.subr.mxu0 0.0
        %831 = vmatpush1.xpose.msra.mxu0 0.0
        %832 = vmatprep.subr.mxu0 0.0
        %833 = vmatpush1.xpose.msra.mxu0 0.0
        %834 = vmatprep.subr.mxu0 0.0
        %835 = vmatpush1.xpose.msra.mxu0 0.0
        %836 = vmatprep.subr.mxu0 0.0
        %837 = vmatpush1.xpose.msra.mxu0 0.0
        %838 = vmatprep.subr.mxu0 0.0
        %839 = vmatpush1.xpose.msra.mxu0 0.0
        %840 = vmatprep.subr.mxu0 0.0
        %841 = vmatpush1.xpose.msra.mxu0 0.0
        %842 = vmatprep.mubr.f32.mxu0 0.0
        %843 = vmatmul.mubr.f32.gmra.mrb[0].mxu0 %v773
        %v844 = vpop.f32.mrb[0].mxu0
        %v845 = vadd.f32 %v768, %v844
        %v846 = vpop.f32.mrb[0].mxu0
        %847 = vdwg.mxu0
        %vm848 = vcmask 64512
        %v849 = vsel %vm848, %v845, -inf
        %850 = vmax.xlane.f32.xlu0 %v849
        %v851 = vpop.xlane.xlu0 %850
        %v852 = vsub.f32 %v845, %v851
        %v853 = vmul.f32 %v852, 1.442695
        %v854 = vpow.pop %v853
        %v855 = vsel %vm848, %v854, 0.0
        %856 = vadd.xlane.f32.xlu0 %v855
        %v857 = vpop.xlane.xlu0 %856
        %v858 = vrcp.pop %v857
        %v860 = vsel %vm848, %v854, 0
        %862 = vmatprep.subr.mxu0 0.0
        %863 = vmatpush1.msra.mxu0 %v771
        %864 = vmatprep.subr.mxu0 0.0
        %865 = vmatpush1.msra.mxu0 0.0
        %866 = vmatprep.subr.mxu0 0.0
        %867 = vmatpush1.msra.mxu0 0.0
        %868 = vmatprep.subr.mxu0 0.0
        %869 = vmatpush1.msra.mxu0 0.0
        %870 = vmatprep.subr.mxu0 0.0
        %871 = vmatpush1.msra.mxu0 0.0
        %872 = vmatprep.subr.mxu0 0.0
        %873 = vmatpush1.msra.mxu0 0.0
        %874 = vmatprep.subr.mxu0 0.0
        %875 = vmatpush1.msra.mxu0 0.0
        %876 = vmatprep.subr.mxu0 0.0
        %877 = vmatpush1.msra.mxu0 0.0
        %878 = vmatprep.subr.mxu0 0.0
        %879 = vmatpush1.msra.mxu0 0.0
        %880 = vmatprep.subr.mxu0 0.0
        %881 = vmatpush1.msra.mxu0 0.0
        %882 = vmatprep.subr.mxu0 0.0
        %883 = vmatpush1.msra.mxu0 0.0
        %884 = vmatprep.subr.mxu0 0.0
        %885 = vmatpush1.msra.mxu0 0.0
        %886 = vmatprep.subr.mxu0 0.0
        %887 = vmatpush1.msra.mxu0 0.0
        %888 = vmatprep.subr.mxu0 0.0
        %889 = vmatpush1.msra.mxu0 0.0
        %890 = vmatprep.subr.mxu0 0.0
        %891 = vmatpush1.msra.mxu0 0.0
        %892 = vmatprep.subr.mxu0 0.0
        %893 = vmatpush1.msra.mxu0 0.0
        %894 = vmatprep.subr.mxu0 0.0
        %895 = vmatpush1.msra.mxu0 0.0
        %896 = vmatprep.subr.mxu0 0.0
        %897 = vmatpush1.msra.mxu0 0.0
        %898 = vmatprep.subr.mxu0 0.0
        %899 = vmatpush1.msra.mxu0 0.0
        %900 = vmatprep.subr.mxu0 0.0
        %901 = vmatpush1.msra.mxu0 0.0
        %902 = vmatprep.subr.mxu0 0.0
        %903 = vmatpush1.msra.mxu0 0.0
        %904 = vmatprep.subr.mxu0 0.0
        %905 = vmatpush1.msra.mxu0 0.0
        %906 = vmatprep.subr.mxu0 0.0
        %907 = vmatpush1.msra.mxu0 0.0
        %908 = vmatprep.subr.mxu0 0.0
        %909 = vmatpush1.msra.mxu0 0.0
        %910 = vmatprep.subr.mxu0 0.0
        %911 = vmatpush1.msra.mxu0 0.0
        %912 = vmatprep.subr.mxu0 0.0
        %913 = vmatpush1.msra.mxu0 0.0
        %914 = vmatprep.subr.mxu0 0.0
        %915 = vmatpush1.msra.mxu0 0.0
        %916 = vmatprep.subr.mxu0 0.0
        %917 = vmatpush1.msra.mxu0 0.0
        %918 = vmatprep.subr.mxu0 0.0
        %919 = vmatpush1.msra.mxu0 0.0
        %920 = vmatprep.subr.mxu0 0.0
        %921 = vmatpush1.msra.mxu0 0.0
        %922 = vmatprep.subr.mxu0 0.0
        %923 = vmatpush1.msra.mxu0 0.0
        %924 = vmatprep.subr.mxu0 0.0
        %925 = vmatpush1.msra.mxu0 0.0
        %926 = vmatprep.mubr.f32.mxu0 0.0
        %927 = vmatmul.mubr.f32.gmra.mrb[0].mxu0 %v860
        %v928 = vpop.f32.mrb[0].mxu0
        %v929 = vadd.f32 0.0, %v928
        %v930 = vpop.f32.mrb[0].mxu0
        %931 = vdwg.mxu0
        %v932 = vmul.f32 %v929, %v858
        %933 = vst.msk [vmem:[#allocation5] sm:$0xff] %vm746, %v932
        %v934 = vld [vmem:[%s754] sm:$0xff]
        %v935 = vld [vmem:[%s760] sm:$0xff]
        %v936 = vld [vmem:[%s766] sm:$0xff]
        %v938 = vsel %vm746, %v934, 0
        %v941 = vsel %vm746, %v935, 0
        %943 = vmatprep.subr.mxu0 0.0
        %944 = vmatpush1.xpose.msra.mxu0 %v941
        %945 = vmatprep.subr.mxu0 0.0
        %946 = vmatpush1.xpose.msra.mxu0 0.0
        %947 = vmatprep.subr.mxu0 0.0
        %948 = vmatpush1.xpose.msra.mxu0 0.0
        %949 = vmatprep.subr.mxu0 0.0
        %950 = vmatpush1.xpose.msra.mxu0 0.0
        %951 = vmatprep.subr.mxu0 0.0
        %952 = vmatpush1.xpose.msra.mxu0 0.0
        %953 = vmatprep.subr.mxu0 0.0
        %954 = vmatpush1.xpose.msra.mxu0 0.0
        %955 = vmatprep.subr.mxu0 0.0
        %956 = vmatpush1.xpose.msra.mxu0 0.0
        %957 = vmatprep.subr.mxu0 0.0
        %958 = vmatpush1.xpose.msra.mxu0 0.0
        %959 = vmatprep.subr.mxu0 0.0
        %960 = vmatpush1.xpose.msra.mxu0 0.0
        %961 = vmatprep.subr.mxu0 0.0
        %962 = vmatpush1.xpose.msra.mxu0 0.0
        %963 = vmatprep.subr.mxu0 0.0
        %964 = vmatpush1.xpose.msra.mxu0 0.0
        %965 = vmatprep.subr.mxu0 0.0
        %966 = vmatpush1.xpose.msra.mxu0 0.0
        %967 = vmatprep.subr.mxu0 0.0
        %968 = vmatpush1.xpose.msra.mxu0 0.0
        %969 = vmatprep.subr.mxu0 0.0
        %970 = vmatpush1.xpose.msra.mxu0 0.0
        %971 = vmatprep.subr.mxu0 0.0
        %972 = vmatpush1.xpose.msra.mxu0 0.0
        %973 = vmatprep.subr.mxu0 0.0
        %974 = vmatpush1.xpose.msra.mxu0 0.0
        %975 = vmatprep.subr.mxu0 0.0
        %976 = vmatpush1.xpose.msra.mxu0 0.0
        %977 = vmatprep.subr.mxu0 0.0
        %978 = vmatpush1.xpose.msra.mxu0 0.0
        %979 = vmatprep.subr.mxu0 0.0
        %980 = vmatpush1.xpose.msra.mxu0 0.0
        %981 = vmatprep.subr.mxu0 0.0
        %982 = vmatpush1.xpose.msra.mxu0 0.0
        %983 = vmatprep.subr.mxu0 0.0
        %984 = vmatpush1.xpose.msra.mxu0 0.0
        %985 = vmatprep.subr.mxu0 0.0
        %986 = vmatpush1.xpose.msra.mxu0 0.0
        %987 = vmatprep.subr.mxu0 0.0
        %988 = vmatpush1.xpose.msra.mxu0 0.0
        %989 = vmatprep.subr.mxu0 0.0
        %990 = vmatpush1.xpose.msra.mxu0 0.0
        %991 = vmatprep.subr.mxu0 0.0
        %992 = vmatpush1.xpose.msra.mxu0 0.0
        %993 = vmatprep.subr.mxu0 0.0
        %994 = vmatpush1.xpose.msra.mxu0 0.0
        %995 = vmatprep.subr.mxu0 0.0
        %996 = vmatpush1.xpose.msra.mxu0 0.0
        %997 = vmatprep.subr.mxu0 0.0
        %998 = vmatpush1.xpose.msra.mxu0 0.0
        %999 = vmatprep.subr.mxu0 0.0
        %1000 = vmatpush1.xpose.msra.mxu0 0.0
        %1001 = vmatprep.subr.mxu0 0.0
        %1002 = vmatpush1.xpose.msra.mxu0 0.0
        %1003 = vmatprep.subr.mxu0 0.0
        %1004 = vmatpush1.xpose.msra.mxu0 0.0
        %1005 = vmatprep.subr.mxu0 0.0
        %1006 = vmatpush1.xpose.msra.mxu0 0.0
        %1007 = vmatprep.mubr.f32.mxu0 0.0
        %1008 = vmatmul.mubr.f32.gmra.mrb[0].mxu0 %v938
        %v1009 = vpop.f32.mrb[0].mxu0
        %v1010 = vadd.f32 %v768, %v1009
        %v1011 = vpop.f32.mrb[0].mxu0
        %1012 = vdwg.mxu0
        %v1013 = vsel %vm848, %v1010, -inf
        %1014 = vmax.xlane.f32.xlu0 %v1013
        %v1015 = vpop.xlane.xlu0 %1014
        %v1016 = vsub.f32 %v1010, %v1015
        %v1017 = vmul.f32 %v1016, 1.442695
        %v1018 = vpow.pop %v1017
        %v1019 = vsel %vm848, %v1018, 0.0
        %1020 = vadd.xlane.f32.xlu0 %v1019
        %v1021 = vpop.xlane.xlu0 %1020
        %v1022 = vrcp.pop %v1021
        %v1024 = vsel %vm848, %v1018, 0
        %1026 = vmatprep.subr.mxu0 0.0
        %1027 = vmatpush1.msra.mxu0 %v936
        %1028 = vmatprep.subr.mxu0 0.0
        %1029 = vmatpush1.msra.mxu0 0.0
        %1030 = vmatprep.subr.mxu0 0.0
        %1031 = vmatpush1.msra.mxu0 0.0
        %1032 = vmatprep.subr.mxu0 0.0
        %1033 = vmatpush1.msra.mxu0 0.0
        %1034 = vmatprep.subr.mxu0 0.0
        %1035 = vmatpush1.msra.mxu0 0.0
        %1036 = vmatprep.subr.mxu0 0.0
        %1037 = vmatpush1.msra.mxu0 0.0
        %1038 = vmatprep.subr.mxu0 0.0
        %1039 = vmatpush1.msra.mxu0 0.0
        %1040 = vmatprep.subr.mxu0 0.0
        %1041 = vmatpush1.msra.mxu0 0.0
        %1042 = vmatprep.subr.mxu0 0.0
        %1043 = vmatpush1.msra.mxu0 0.0
        %1044 = vmatprep.subr.mxu0 0.0
        %1045 = vmatpush1.msra.mxu0 0.0
        %1046 = vmatprep.subr.mxu0 0.0
        %1047 = vmatpush1.msra.mxu0 0.0
        %1048 = vmatprep.subr.mxu0 0.0
        %1049 = vmatpush1.msra.mxu0 0.0
        %1050 = vmatprep.subr.mxu0 0.0
        %1051 = vmatpush1.msra.mxu0 0.0
        %1052 = vmatprep.subr.mxu0 0.0
        %1053 = vmatpush1.msra.mxu0 0.0
        %1054 = vmatprep.subr.mxu0 0.0
        %1055 = vmatpush1.msra.mxu0 0.0
        %1056 = vmatprep.subr.mxu0 0.0
        %1057 = vmatpush1.msra.mxu0 0.0
        %1058 = vmatprep.subr.mxu0 0.0
        %1059 = vmatpush1.msra.mxu0 0.0
        %1060 = vmatprep.subr.mxu0 0.0
        %1061 = vmatpush1.msra.mxu0 0.0
        %1062 = vmatprep.subr.mxu0 0.0
        %1063 = vmatpush1.msra.mxu0 0.0
        %1064 = vmatprep.subr.mxu0 0.0
        %1065 = vmatpush1.msra.mxu0 0.0
        %1066 = vmatprep.subr.mxu0 0.0
        %1067 = vmatpush1.msra.mxu0 0.0
        %1068 = vmatprep.subr.mxu0 0.0
        %1069 = vmatpush1.msra.mxu0 0.0
        %1070 = vmatprep.subr.mxu0 0.0
        %1071 = vmatpush1.msra.mxu0 0.0
        %1072 = vmatprep.subr.mxu0 0.0
        %1073 = vmatpush1.msra.mxu0 0.0
        %1074 = vmatprep.subr.mxu0 0.0
        %1075 = vmatpush1.msra.mxu0 0.0
        %1076 = vmatprep.subr.mxu0 0.0
        %1077 = vmatpush1.msra.mxu0 0.0
        %1078 = vmatprep.subr.mxu0 0.0
        %1079 = vmatpush1.msra.mxu0 0.0
        %1080 = vmatprep.subr.mxu0 0.0
        %1081 = vmatpush1.msra.mxu0 0.0
        %1082 = vmatprep.subr.mxu0 0.0
        %1083 = vmatpush1.msra.mxu0 0.0
        %1084 = vmatprep.subr.mxu0 0.0
        %1085 = vmatpush1.msra.mxu0 0.0
        %1086 = vmatprep.subr.mxu0 0.0
        %1087 = vmatpush1.msra.mxu0 0.0
        %1088 = vmatprep.subr.mxu0 0.0
        %1089 = vmatpush1.msra.mxu0 0.0
        %1090 = vmatprep.mubr.f32.mxu0 0.0
        %1091 = vmatmul.mubr.f32.gmra.mrb[0].mxu0 %v1024
        %v1092 = vpop.f32.mrb[0].mxu0
        %v1093 = vadd.f32 0.0, %v1092
        %v1094 = vpop.f32.mrb[0].mxu0
        %1095 = vdwg.mxu0
        %v1096 = vmul.f32 %v1093, %v1022
        %s1097 = scalar_lea.vmem [#allocation5], 8
        %1098 = vst.msk [vmem:[%s1097] sm:$0xff] %vm746, %v1096
        %v1099 = vld [vmem:[#allocation5] sm:$0xff]
        %v1100 = vld [vmem:[%s1097] sm:$0xff]
        %1102 = vrot.lane.b32.xlu0 %v1100, 16
        %v1103 = vpop.permute.xlu0 %1102
        %v1105 = vsel %vm746, %v1099, %v1103
        %v1106 = vld [vmem:[#allocation17] sm:$0xff]
        %v1107 = vld [vmem:[#allocation17 + $0x8] sm:$0xff]
        %v1108 = vld [vmem:[#allocation17 + $0x10] sm:$0xff]
        %v1109 = vld [vmem:[#allocation17 + $0x18] sm:$0xff]
        %v1110 = vld [vmem:[%s8] sm:$0x1]
        %v1112 = vlaneseq
        %v1113 = vshrl.u32 %v1112, 7
        %v1114 = vsub.s32 0, %v1113
        %v1115 = vrot.slane %v1110, %v1114
        %v1118 = vsel %vm516, %v1105, 0
        %1120 = vmatprep.subr.mxu0 0.0
        %1121 = vmatpush1.msra.mxu0 %v1106
        %1122 = vmatprep.subr.mxu0 0.0
        %1123 = vmatpush1.msra.mxu0 %v1107
        %1124 = vmatprep.subr.mxu0 0.0
        %1125 = vmatpush1.msra.mxu0 %v1108
        %1126 = vmatprep.subr.mxu0 0.0
        %1127 = vmatpush1.msra.mxu0 %v1109
        %1128 = vmatprep.subr.mxu0 0.0
        %1129 = vmatpush1.msra.mxu0 0.0
        %1130 = vmatprep.subr.mxu0 0.0
        %1131 = vmatpush1.msra.mxu0 0.0
        %1132 = vmatprep.subr.mxu0 0.0
        %1133 = vmatpush1.msra.mxu0 0.0
        %1134 = vmatprep.subr.mxu0 0.0
        %1135 = vmatpush1.msra.mxu0 0.0
        %1136 = vmatprep.subr.mxu0 0.0
        %1137 = vmatpush1.msra.mxu0 0.0
        %1138 = vmatprep.subr.mxu0 0.0
        %1139 = vmatpush1.msra.mxu0 0.0
        %1140 = vmatprep.subr.mxu0 0.0
        %1141 = vmatpush1.msra.mxu0 0.0
        %1142 = vmatprep.subr.mxu0 0.0
        %1143 = vmatpush1.msra.mxu0 0.0
        %1144 = vmatprep.subr.mxu0 0.0
        %1145 = vmatpush1.msra.mxu0 0.0
        %1146 = vmatprep.subr.mxu0 0.0
        %1147 = vmatpush1.msra.mxu0 0.0
        %1148 = vmatprep.subr.mxu0 0.0
        %1149 = vmatpush1.msra.mxu0 0.0
        %1150 = vmatprep.subr.mxu0 0.0
        %1151 = vmatpush1.msra.mxu0 0.0
        %1152 = vmatprep.subr.mxu0 0.0
        %1153 = vmatpush1.msra.mxu0 0.0
        %1154 = vmatprep.subr.mxu0 0.0
        %1155 = vmatpush1.msra.mxu0 0.0
        %1156 = vmatprep.subr.mxu0 0.0
        %1157 = vmatpush1.msra.mxu0 0.0
        %1158 = vmatprep.subr.mxu0 0.0
        %1159 = vmatpush1.msra.mxu0 0.0
        %1160 = vmatprep.subr.mxu0 0.0
        %1161 = vmatpush1.msra.mxu0 0.0
        %1162 = vmatprep.subr.mxu0 0.0
        %1163 = vmatpush1.msra.mxu0 0.0
        %1164 = vmatprep.subr.mxu0 0.0
        %1165 = vmatpush1.msra.mxu0 0.0
        %1166 = vmatprep.subr.mxu0 0.0
        %1167 = vmatpush1.msra.mxu0 0.0
        %1168 = vmatprep.subr.mxu0 0.0
        %1169 = vmatpush1.msra.mxu0 0.0
        %1170 = vmatprep.subr.mxu0 0.0
        %1171 = vmatpush1.msra.mxu0 0.0
        %1172 = vmatprep.subr.mxu0 0.0
        %1173 = vmatpush1.msra.mxu0 0.0
        %1174 = vmatprep.subr.mxu0 0.0
        %1175 = vmatpush1.msra.mxu0 0.0
        %1176 = vmatprep.subr.mxu0 0.0
        %1177 = vmatpush1.msra.mxu0 0.0
        %1178 = vmatprep.subr.mxu0 0.0
        %1179 = vmatpush1.msra.mxu0 0.0
        %1180 = vmatprep.subr.mxu0 0.0
        %1181 = vmatpush1.msra.mxu0 0.0
        %1182 = vmatprep.subr.mxu0 0.0
        %1183 = vmatpush1.msra.mxu0 0.0
        %1184 = vmatprep.mubr.f32.mxu0 0.0
        %1185 = vmatmul.mubr.f32.gmra.mrb[0].mxu0 %v1118
        %v1186 = vpop.f32.mrb[0].mxu0
        %v1187 = vadd.f32 %v1115, %v1186
        %v1188 = vpop.f32.mrb[0].mxu0
        %1189 = vdwg.mxu0
        %1190 = vst.msk [vmem:[%s506] sm:$0xff] %vm516, %v1187
        %s1191 = sand.u32 %s264, 1
        %s1192 = scalar_lea.sflag [#allocation8], %s1191
        %s1193 = sand.u32 %s264, 1
        %s1194 = smul.addr %s1193, 8
        %s1195 = scalar_lea.vmem [#allocation18], %s1194
        // Predicated region
        $region85: #{tpu_custom_call.1} parent=55 // pred_check
          %p1196 = pneg %p274
        $region86: #{tpu_custom_call.1} parent=55 // pred_check_branch
          %1198 = sbr.rel (%p1196) target = $region88
        $region87: #{tpu_custom_call.1} parent=55 // pred_region
          %s1200 = ssub.s32 128, 128
          %1201 = vsyncadd %s1192, %s1200
          %s1202 = sadd.s32 %s36, %s35
          %s1203 = smul.addr %s1202, 128
          %s1204 = scalar_lea.hbm %s9, %s1203
          %s1206 = sshll.u32 %s1195, 4
          %s1207 = int_to_ptr.vmem [resolvable:$true] %s1206
          %1209 = dma.vmem_to_hbm [thread:$0]  %s1207, 128, %s1204, %s1192
        $region88: #{tpu_custom_call.1} parent=55 // pred_fallthru
          _
      $region56: #{tpu_custom_call.1} parent=5 // pred_fallthru
        _
      %p1210 = scmp.le.s32.totalorder 2, %s26
      // Predicated region
      $region89: #{tpu_custom_call.1} parent=5 // pred_check
        %p1211 = pneg %p1210
      $region90: #{tpu_custom_call.1} parent=5 // pred_check_branch
        %1213 = sbr.rel (%p1211) target = $region92
      $region91: #{tpu_custom_call.1} parent=5 // pred_region
        %s1214 = ssub.s32 %s26, 2
        // Predicated region
        $region93: #{tpu_custom_call.1} parent=91 // pred_check
          %p1215 = pneg %p280
        $region94: #{tpu_custom_call.1} parent=91 // pred_check_branch
          %1217 = sbr.rel (%p1215) target = $region96
        $region95: #{tpu_custom_call.1} parent=91 // pred_region
          %s1218 = sand.u32 %s265, 1
          %s1219 = scalar_lea.sflag [#allocation8], %s1218
          %s1220 = sand.u32 %s265, 1
          %s1221 = smul.addr %s1220, 8
          %s1222 = scalar_lea.vmem [#allocation18], %s1221
          %1223 = dma.done %s1219, 128
        $region96: #{tpu_custom_call.1} parent=91 // pred_fallthru
          _
      $region92: #{tpu_custom_call.1} parent=5 // pred_fallthru
        _
    $region6: #{tpu_custom_call.1} parent=1 // loop_footer
      %s30 = sadd.s32 1, %s26
    $region7: #{tpu_custom_call.1} parent=1 // loop_footer_branch
      %25 = sbr.rel target = $region3
    $region8: #{tpu_custom_call.1} parent=1 // loop_exit
      _
    %1224 = vsyncpa [#allocation7], 1
    %s1225 = scalar_lea.sflag [#allocation7], 1
    %1226 = vsyncpa %s1225, 1
    %1227 = vsyncpa [#allocation10], 1
    %s1228 = scalar_lea.sflag [#allocation10], 1
    %1229 = vsyncpa %s1228, 1
    %1230 = vsyncpa [#allocation13], 1
    %1231 = vsyncpa [#allocation16], 1
    %1232 = vsyncpa [#allocation8], 1
    %s1233 = scalar_lea.sflag [#allocation8], 1
    %1234 = vsyncpa %s1233, 1

</llo_original>
